<compile_context>
chip_gen: v5e
topology: v5e:2x2
jax: 0.10.0
libtpu: 0.0.40
codegen_flags: <defaults>
</compile_context>

<pallas_src>
import jax
import jax.numpy as jnp
from jax.experimental import pallas as pl
from jax.experimental.pallas import tpu as pltpu

# ----------------------------- small synthetic config -----------------------
VOCAB = 64
D = 32                 # hidden size
H = 4                  # attention heads
HD = D // H            # head dim
FF = 4 * D             # MLP intermediate size
CLIP_MAX_LEN = 8       # per-chunk seq length (stands in for 77)
N_CHUNKS = 2           # max_length = CLIP_MAX_LEN * ceil(154/77) -> 2 chunks
SEQ = CLIP_MAX_LEN * N_CHUNKS
N_LAYERS = 2
B = 2
EPS = 1e-5
NEG = float(jnp.finfo(jnp.float32).min)   # torch.finfo(dtype).min
SCALE = HD ** -0.5                        # CLIP scales q by head_dim**-0.5


def _layernorm(x, g, b):
    # statistics kept in f32 (x is the f32 residual stream)
    mu = jnp.mean(x, axis=-1, keepdims=True)
    var = jnp.mean((x - mu) ** 2, axis=-1, keepdims=True)
    return (x - mu) * jax.lax.rsqrt(var + EPS) * g + b


# ------------------------------ fused Pallas kernel --------------------------
def clip_layer_kernel(x_ref, amask_ref,
                      ln1_g, ln1_b, wqkv, bqkv, wo, bo,
                      ln2_g, ln2_b, w1, b1, w2, b2,
                      fln_g, fln_b, o_ref, res_ref):
    """One CLIPEncoderLayer per grid step; final LayerNorm fused on the last step.

    Grid = (batch, layer).  The f32 residual stream lives in `res_ref` (VMEM
    scratch) across layer steps; per-layer weights are streamed per grid step.
    """
    l = pl.program_id(1)
    n_layers = pl.num_programs(1)

    @pl.when(l == 0)
    def _():
        res_ref[...] = x_ref[0]           # load embeddings once per batch element

    x = res_ref[...]                      # (S, D) f32 residual stream
    m = amask_ref[0]                      # (1, S) int32 key-padding mask
    S = x.shape[0]

    # causal + key-padding mask built in-kernel: O(S) HBM traffic instead of O(S^2),
    # and jnp.where avoids the NEG + NEG float32 overflow of an additive mask.
    row = jax.lax.broadcasted_iota(jnp.int32, (S, S), 0)
    col = jax.lax.broadcasted_iota(jnp.int32, (S, S), 1)
    valid = (col <= row) & (m > 0)        # (S, S) bool

    # ---- self attention (pre-LN) ----
    xn = _layernorm(x, ln1_g[0], ln1_b[0])
    # fused full-width QKV projection: (S,D) @ (D,3D), lane-dense output + bias
    qkv = jnp.dot(xn.astype(jnp.bfloat16), wqkv[0],
                  preferred_element_type=jnp.float32) + bqkv[0]         # (S, 3D) f32
    # view into heads (softmax scale already folded into the Q columns / bias)
    q = qkv[:, 0 * D:1 * D].reshape(S, H, HD).transpose(1, 0, 2)        # (H, S, HD)
    k = qkv[:, 1 * D:2 * D].reshape(S, H, HD).transpose(1, 0, 2)
    v = qkv[:, 2 * D:3 * D].reshape(S, H, HD).transpose(1, 0, 2)

    s = jnp.einsum('hqe,hke->hqk', q.astype(jnp.bfloat16), k.astype(jnp.bfloat16),
                   preferred_element_type=jnp.float32)                  # (H, S, S)
    s = jnp.where(valid[None], s, NEG)
    s = s - jnp.max(s, axis=-1, keepdims=True)                          # f32 softmax
    p = jnp.exp(s)
    p = p * pl.reciprocal(jnp.sum(p, axis=-1, keepdims=True), approx=True)

    ctx = jnp.einsum('hqk,hke->hqe', p.astype(jnp.bfloat16), v.astype(jnp.bfloat16),
                     preferred_element_type=jnp.float32)                # (H, S, HD)
    # head reduction folded into the out-projection: concat(heads) -> one (S,D)@(D,D)
    ctx2 = ctx.transpose(1, 0, 2).reshape(S, D)                         # (S, H*HD)
    attn = jnp.dot(ctx2.astype(jnp.bfloat16), wo[0],
                   preferred_element_type=jnp.float32) + bo[0]          # (S, D)
    x = x + attn

    # ---- MLP (pre-LN, quick_gelu) ----
    xn2 = _layernorm(x, ln2_g[0], ln2_b[0])
    h1 = jnp.dot(xn2.astype(jnp.bfloat16), w1[0],
                 preferred_element_type=jnp.float32) + b1[0]            # (S, FF)
    h1 = h1 * jax.nn.sigmoid(1.702 * h1)                                # CLIP quick_gelu
    h2 = jnp.dot(h1.astype(jnp.bfloat16), w2[0],
                 preferred_element_type=jnp.float32) + b2[0]
    x = x + h2

    res_ref[...] = x                      # carry residual to the next layer step

    # ---- final LayerNorm + the only HBM store, on the last layer step ----
    @pl.when(l == n_layers - 1)
    def _():
        o_ref[0] = _layernorm(x, fln_g[...], fln_b[...]).astype(o_ref.dtype)


# ------------------------------ wrappers --------------------------------------
_PER_LAYER_KEYS = ('ln1_g', 'ln1_b', 'wqkv', 'bqkv', 'wo', 'bo',
                   'ln2_g', 'ln2_b', 'w1', 'b1', 'w2', 'b2')


def _layer_spec(arr):
    # per-layer block streamed along the layer grid axis (double-buffered by Pallas)
    n_trail = arr.ndim - 1
    return pl.BlockSpec((1,) + arr.shape[1:],
                        lambda b, l, n=n_trail: (l,) + (0,) * n)


def _const_spec(arr):
    # tiny constant-index block (final LayerNorm params): same block every step
    n = arr.ndim
    return pl.BlockSpec(arr.shape, lambda b, l, n=n: (0,) * n)


def clip_text_encoder(hidden, attention_mask, prep):
    """Single fused pallas_call over the full encoder stack + final LN.

    grid = (B, N_LAYERS): batch axis parallel (megacore), layer axis arbitrary
    so per-layer weight DMA pipelines behind the previous layer's compute.
    """
    bsz, s, d = hidden.shape
    amask = attention_mask.reshape(bsz, 1, s).astype(jnp.int32)   # (B, 1, S)
    layer_w = [prep[k] for k in _PER_LAYER_KEYS]
    final_w = [prep['fln_g'], prep['fln_b']]
    # Note: at real CLIP sizes (D=768, FF=3072) a single layer's bf16 weights are
    # ~7 MB (x2 buffers), comfortably inside default scoped VMEM on all gens, so
    # no vmem_limit_bytes override is needed.
    return pl.pallas_call(
        clip_layer_kernel,
        out_shape=jax.ShapeDtypeStruct((bsz, s, d), jnp.float32),
        grid=(bsz, N_LAYERS),
        in_specs=[pl.BlockSpec((1, s, d), lambda b, l: (b, 0, 0)),
                  pl.BlockSpec((1, 1, s), lambda b, l: (b, 0, 0))]
                 + [_layer_spec(w) for w in layer_w]
                 + [_const_spec(w) for w in final_w],
        out_specs=pl.BlockSpec((1, s, d), lambda b, l: (b, 0, 0)),
        scratch_shapes=[pltpu.VMEM((s, d), jnp.float32)],   # residual stream carry
        compiler_params=pltpu.CompilerParams(
            dimension_semantics=("parallel", "arbitrary")),
    )(hidden, amask, *layer_w, *final_w)


def frozen_clip_embedder_forward(params, prep, input_ids, attention_mask,
                                 return_attn_mask=True):
    """Mirrors FrozenCLIPEmbedder.forward / clip_transformer_forward.

    input_ids:      int32 [B, SEQ]   (SEQ = CLIP_MAX_LEN * N_CHUNKS)
    attention_mask: int32 [B, SEQ]   (1 = real token, 0 = padding)
    """
    # TODO(synk): HF CLIPTokenizer (text -> token ids) has no Pallas equivalent;
    #             this wrapper consumes the tokenizer outputs (ids + mask) directly.
    bsz, total_len = input_ids.shape
    n_chunks = total_len // CLIP_MAX_LEN

    # embeddings: per-chunk of clip_max_length, positions restart per chunk,
    # chunks concatenated along seq (== input_ids.split + torch.cat).
    # The gather stays in plain JAX; everything downstream is one Pallas call.
    hs = []
    for i in range(n_chunks):
        ids = input_ids[:, i * CLIP_MAX_LEN:(i + 1) * CLIP_MAX_LEN]
        hs.append(params['tok_emb'][ids] + params['pos_emb'][None, :, :])
    hidden = jnp.concatenate(hs, axis=1)                      # [B, SEQ, D] f32

    z = clip_text_encoder(hidden, attention_mask, prep)

    attn_mask_bool = attention_mask.astype(jnp.bool_)
    if return_attn_mask:
        return z, attn_mask_bool
    return z


# ------------------------------ params ----------------------------------------
def init_params(key):
    """Standard (PyTorch-like, [in, out]) parameter layout."""
    keys = iter(jax.random.split(key, 2 + 6 * N_LAYERS))

    def nrm(shape):
        return 0.02 * jax.random.normal(next(keys), shape, jnp.float32)

    params = {
        'tok_emb': nrm((VOCAB, D)),
        'pos_emb': nrm((CLIP_MAX_LEN, D)),
        'fln_g': jnp.ones((D,), jnp.float32),
        'fln_b': jnp.zeros((D,), jnp.float32),
        'layers': [],
    }
    for _ in range(N_LAYERS):
        params['layers'].append({
            'ln1_g': jnp.ones((D,), jnp.float32), 'ln1_b': jnp.zeros((D,), jnp.float32),
            'wq': nrm((D, D)), 'bq': jnp.zeros((D,), jnp.float32),
            'wk': nrm((D, D)), 'bk': jnp.zeros((D,), jnp.float32),
            'wv': nrm((D, D)), 'bv': jnp.zeros((D,), jnp.float32),
            'wo': nrm((D, D)), 'bo': jnp.zeros((D,), jnp.float32),
            'ln2_g': jnp.ones((D,), jnp.float32), 'ln2_b': jnp.zeros((D,), jnp.float32),
            'w1': nrm((D, FF)), 'b1': jnp.zeros((FF,), jnp.float32),
            'w2': nrm((FF, D)), 'b2': jnp.zeros((D,), jnp.float32),
        })
    return params


def prepare_params(params):
    """Host-side one-time prep: stack layers on a leading L axis, fuse Wq|Wk|Wv
    into a (L, D, 3D) QKV weight (softmax scale folded into the Q columns/bias),
    keep Wo as (L, D, D), and cast matmul weights to bf16."""
    L = len(params['layers'])

    def stack(name):
        return jnp.stack([lp[name] for lp in params['layers']], axis=0)

    wqkv = jnp.concatenate([stack('wq') * SCALE, stack('wk'), stack('wv')],
                           axis=-1)                                   # (L, D, 3D)
    bqkv = jnp.concatenate([stack('bq') * SCALE, stack('bk'), stack('bv')],
                           axis=-1)                                   # (L, 3D)

    return {
        'ln1_g': stack('ln1_g').reshape(L, 1, D),
        'ln1_b': stack('ln1_b').reshape(L, 1, D),
        'wqkv': wqkv.astype(jnp.bfloat16),
        'bqkv': bqkv.reshape(L, 1, 3 * D),
        'wo': stack('wo').astype(jnp.bfloat16),                       # (L, D, D)
        'bo': stack('bo').reshape(L, 1, D),
        'ln2_g': stack('ln2_g').reshape(L, 1, D),
        'ln2_b': stack('ln2_b').reshape(L, 1, D),
        'w1': stack('w1').astype(jnp.bfloat16),
        'b1': stack('b1').reshape(L, 1, FF),
        'w2': stack('w2').astype(jnp.bfloat16),
        'b2': stack('b2').reshape(L, 1, D),
        'fln_g': params['fln_g'].reshape(1, D),
        'fln_b': params['fln_b'].reshape(1, D),
    }


# ------------------------------ main -------------------------------------------
if __name__ == "__main__":
    key = jax.random.PRNGKey(0)
    pkey, ikey = jax.random.split(key)
    params = init_params(pkey)
    prep = prepare_params(params)

    # deterministic "tokenized" inputs: ids in [0, VOCAB), padded with mask
    input_ids = jax.random.randint(ikey, (B, SEQ), 0, VOCAB, dtype=jnp.int32)
    lengths = jnp.array([12, SEQ], dtype=jnp.int32)           # example padding
    attention_mask = (jnp.arange(SEQ)[None, :] < lengths[:, None]).astype(jnp.int32)

    z, attn_mask = frozen_clip_embedder_forward(params, prep, input_ids, attention_mask)
    jax.block_until_ready((z, attn_mask))

    assert z.shape == (B, SEQ, D) and z.dtype == jnp.float32
    assert attn_mask.shape == (B, SEQ) and attn_mask.dtype == jnp.bool_
    print("KERNEL_OK")
</pallas_src>

<mosaic_0001>
module attributes {stable_mosaic.version = 11 : i64} {
  func.func @clip_layer_kernel(%arg0: i32, %arg1: i32, %arg2: memref<1x16x32xf32, #tpu.memory_space<vmem>>, %arg3: memref<1x1x16xi32, #tpu.memory_space<vmem>>, %arg4: memref<1x1x32xf32, #tpu.memory_space<vmem>>, %arg5: memref<1x1x32xf32, #tpu.memory_space<vmem>>, %arg6: memref<1x32x96xbf16, #tpu.memory_space<vmem>>, %arg7: memref<1x1x96xf32, #tpu.memory_space<vmem>>, %arg8: memref<1x32x32xbf16, #tpu.memory_space<vmem>>, %arg9: memref<1x1x32xf32, #tpu.memory_space<vmem>>, %arg10: memref<1x1x32xf32, #tpu.memory_space<vmem>>, %arg11: memref<1x1x32xf32, #tpu.memory_space<vmem>>, %arg12: memref<1x32x128xbf16, #tpu.memory_space<vmem>>, %arg13: memref<1x1x128xf32, #tpu.memory_space<vmem>>, %arg14: memref<1x128x32xbf16, #tpu.memory_space<vmem>>, %arg15: memref<1x1x32xf32, #tpu.memory_space<vmem>>, %arg16: memref<1x32xf32, #tpu.memory_space<vmem>>, %arg17: memref<1x32xf32, #tpu.memory_space<vmem>>, %arg18: memref<1x16x32xf32, #tpu.memory_space<vmem>>, %arg19: memref<16x32xf32, #tpu.memory_space<vmem>>) attributes {dimension_semantics = [#tpu.dimension_semantics<parallel>, #tpu.dimension_semantics<arbitrary>], iteration_bounds = array<i64: 2, 2>, scalar_prefetch = 0 : i64, scratch_operands = 1 : i64, tpu.core_type = #tpu.core_type<tc>, window_params = [{transform_indices = @transform_0, window_bounds = array<i64: 1, 16, 32>}, {transform_indices = @transform_1, window_bounds = array<i64: 1, 1, 16>}, {transform_indices = @transform_2, window_bounds = array<i64: 1, 1, 32>}, {transform_indices = @transform_3, window_bounds = array<i64: 1, 1, 32>}, {transform_indices = @transform_4, window_bounds = array<i64: 1, 32, 96>}, {transform_indices = @transform_5, window_bounds = array<i64: 1, 1, 96>}, {transform_indices = @transform_6, window_bounds = array<i64: 1, 32, 32>}, {transform_indices = @transform_7, window_bounds = array<i64: 1, 1, 32>}, {transform_indices = @transform_8, window_bounds = array<i64: 1, 1, 32>}, {transform_indices = @transform_9, window_bounds = array<i64: 1, 1, 32>}, {transform_indices = @transform_10, window_bounds = array<i64: 1, 32, 128>}, {transform_indices = @transform_11, window_bounds = array<i64: 1, 1, 128>}, {transform_indices = @transform_12, window_bounds = array<i64: 1, 128, 32>}, {transform_indices = @transform_13, window_bounds = array<i64: 1, 1, 32>}, {pipeline_mode = #tpu.pipeline_mode<synchronous>, transform_indices = @transform_14, window_bounds = array<i64: 1, 32>}, {pipeline_mode = #tpu.pipeline_mode<synchronous>, transform_indices = @transform_15, window_bounds = array<i64: 1, 32>}, {transform_indices = @transform_16, window_bounds = array<i64: 1, 16, 32>}]} {
    %c0_i32 = arith.constant 0 : i32
    %0 = arith.cmpi eq, %arg1, %c0_i32 : i32
    %1 = arith.extui %0 : i1 to i32
    %c0_i32_0 = arith.constant 0 : i32
    %2 = arith.cmpi ne, %1, %c0_i32_0 : i32
    scf.if %2 {
      %c0_65 = arith.constant 0 : index
      %c0_66 = arith.constant 0 : index
      %c0_67 = arith.constant 0 : index
      %143 = vector.load %arg2[%c0_65, %c0_66, %c0_67] : memref<1x16x32xf32, #tpu.memory_space<vmem>>, vector<1x16x32xf32>
      %144 = vector.shape_cast %143 : vector<1x16x32xf32> to vector<16x32xf32>
      %c0_68 = arith.constant 0 : index
      %c0_69 = arith.constant 0 : index
      %145 = vector.load %arg19[%c0_68, %c0_69] : memref<16x32xf32, #tpu.memory_space<vmem>>, vector<16x32xf32>
      tpu.vector_store %arg19[%c0_68, %c0_69], %144 {strides = array<i32>} : memref<16x32xf32, #tpu.memory_space<vmem>>, vector<16x32xf32>,
    } else {
    }
    %c0 = arith.constant 0 : index
    %c0_1 = arith.constant 0 : index
    %3 = vector.load %arg19[%c0, %c0_1] : memref<16x32xf32, #tpu.memory_space<vmem>>, vector<16x32xf32>
    %c0_2 = arith.constant 0 : index
    %c0_3 = arith.constant 0 : index
    %c0_4 = arith.constant 0 : index
    %4 = vector.load %arg3[%c0_2, %c0_3, %c0_4] : memref<1x1x16xi32, #tpu.memory_space<vmem>>, vector<1x1x16xi32>
    %5 = vector.shape_cast %4 : vector<1x1x16xi32> to vector<1x16xi32>
    %6 = tpu.iota {dimensions = array<i32: 0>} : vector<16x16xi32>
    %7 = tpu.iota {dimensions = array<i32: 1>} : vector<16x16xi32>
    %8 = arith.cmpi sle, %7, %6 : vector<16x16xi32>
    %c0_i32_5 = arith.constant 0 : i32
    %9 = vector.broadcast %c0_i32_5 : i32 to vector<1x16xi32>
    %10 = arith.cmpi sgt, %5, %9 : vector<1x16xi32>
    %11 = vector.broadcast %10 : vector<1x16xi1> to vector<16x16xi1>
    %12 = arith.andi %8, %11 : vector<16x16xi1>
    %c0_6 = arith.constant 0 : index
    %c0_7 = arith.constant 0 : index
    %c0_8 = arith.constant 0 : index
    %13 = vector.load %arg4[%c0_6, %c0_7, %c0_8] : memref<1x1x32xf32, #tpu.memory_space<vmem>>, vector<1x1x32xf32>
    %14 = vector.shape_cast %13 : vector<1x1x32xf32> to vector<1x32xf32>
    %c0_9 = arith.constant 0 : index
    %c0_10 = arith.constant 0 : index
    %c0_11 = arith.constant 0 : index
    %15 = vector.load %arg5[%c0_9, %c0_10, %c0_11] : memref<1x1x32xf32, #tpu.memory_space<vmem>>, vector<1x1x32xf32>
    %16 = vector.shape_cast %15 : vector<1x1x32xf32> to vector<1x32xf32>
    %cst = arith.constant dense<0.000000e+00> : vector<16xf32>
    %17 = vector.multi_reduction <add>, %3, %cst [1] : vector<16x32xf32> to vector<16xf32>
    %18 = vector.shape_cast %17 : vector<16xf32> to vector<16x1xf32>
    %cst_12 = arith.constant 3.200000e+01 : f32
    %19 = vector.broadcast %cst_12 : f32 to vector<16x1xf32>
    %20 = arith.divf %18, %19 : vector<16x1xf32>
    %21 = vector.broadcast %20 : vector<16x1xf32> to vector<16x32xf32>
    %22 = arith.subf %3, %21 : vector<16x32xf32>
    %23 = arith.mulf %22, %22 : vector<16x32xf32>
    %cst_13 = arith.constant dense<0.000000e+00> : vector<16xf32>
    %24 = vector.multi_reduction <add>, %23, %cst_13 [1] : vector<16x32xf32> to vector<16xf32>
    %25 = vector.shape_cast %24 : vector<16xf32> to vector<16x1xf32>
    %cst_14 = arith.constant 3.200000e+01 : f32
    %26 = vector.broadcast %cst_14 : f32 to vector<16x1xf32>
    %27 = arith.divf %25, %26 : vector<16x1xf32>
    %28 = vector.broadcast %20 : vector<16x1xf32> to vector<16x32xf32>
    %29 = arith.subf %3, %28 : vector<16x32xf32>
    %cst_15 = arith.constant 9.99999974E-6 : f32
    %30 = vector.broadcast %cst_15 : f32 to vector<16x1xf32>
    %31 = arith.addf %27, %30 : vector<16x1xf32>
    %32 = math.rsqrt %31 : vector<16x1xf32>
    %33 = vector.broadcast %32 : vector<16x1xf32> to vector<16x32xf32>
    %34 = arith.mulf %29, %33 : vector<16x32xf32>
    %35 = vector.broadcast %14 : vector<1x32xf32> to vector<16x32xf32>
    %36 = arith.mulf %34, %35 : vector<16x32xf32>
    %37 = vector.broadcast %16 : vector<1x32xf32> to vector<16x32xf32>
    %38 = arith.addf %36, %37 : vector<16x32xf32>
    %39 = arith.truncf %38 : vector<16x32xf32> to vector<16x32xbf16>
    %c0_16 = arith.constant 0 : index
    %c0_17 = arith.constant 0 : index
    %c0_18 = arith.constant 0 : index
    %40 = vector.load %arg6[%c0_16, %c0_17, %c0_18] : memref<1x32x96xbf16, #tpu.memory_space<vmem>>, vector<1x32x96xbf16>
    %41 = vector.shape_cast %40 : vector<1x32x96xbf16> to vector<32x96xbf16>
    %cst_19 = arith.constant dense<0.000000e+00> : vector<16x96xf32>
    %42 = tpu.matmul %39, %41, %cst_19 {dimension_numbers = #tpu.dot_dimension_numbers<[1], [0], [0], [1], [0, 0, 1, 1], [], []>} : vector<16x32xbf16>, vector<32x96xbf16>, vector<16x96xf32> -> vector<16x96xf32>
    %c0_20 = arith.constant 0 : index
    %c0_21 = arith.constant 0 : index
    %c0_22 = arith.constant 0 : index
    %43 = vector.load %arg7[%c0_20, %c0_21, %c0_22] : memref<1x1x96xf32, #tpu.memory_space<vmem>>, vector<1x1x96xf32>
    %44 = vector.shape_cast %43 : vector<1x1x96xf32> to vector<1x96xf32>
    %45 = vector.broadcast %44 : vector<1x96xf32> to vector<16x96xf32>
    %46 = arith.addf %42, %45 : vector<16x96xf32>
    %47 = vector.extract_strided_slice %46 {offsets = [0, 0], sizes = [16, 32], strides = [1, 1]} : vector<16x96xf32> to vector<16x32xf32>
    %48 = vector.shape_cast %47 : vector<16x32xf32> to vector<16x4x8xf32>
    %49 = tpu.transpose %48, [1, 0, 2] : vector<16x4x8xf32> -> vector<4x16x8xf32>
    %50 = vector.extract_strided_slice %46 {offsets = [0, 32], sizes = [16, 32], strides = [1, 1]} : vector<16x96xf32> to vector<16x32xf32>
    %51 = vector.shape_cast %50 : vector<16x32xf32> to vector<16x4x8xf32>
    %52 = tpu.transpose %51, [1, 0, 2] : vector<16x4x8xf32> -> vector<4x16x8xf32>
    %53 = vector.extract_strided_slice %46 {offsets = [0, 64], sizes = [16, 32], strides = [1, 1]} : vector<16x96xf32> to vector<16x32xf32>
    %54 = vector.shape_cast %53 : vector<16x32xf32> to vector<16x4x8xf32>
    %55 = tpu.transpose %54, [1, 0, 2] : vector<16x4x8xf32> -> vector<4x16x8xf32>
    %56 = arith.truncf %49 : vector<4x16x8xf32> to vector<4x16x8xbf16>
    %57 = arith.truncf %52 : vector<4x16x8xf32> to vector<4x16x8xbf16>
    "tpu.trace_start"() <{level = 10 : i32, message = "hqe,hke->hqk"}> : () -> ()
    %cst_23 = arith.constant dense<0.000000e+00> : vector<4x16x16xf32>
    %58 = tpu.matmul %56, %57, %cst_23 {dimension_numbers = #tpu.dot_dimension_numbers<[2], [2], [1], [1], [0, 0, 0, 1, 1, 1], [0], [0]>} : vector<4x16x8xbf16>, vector<4x16x8xbf16>, vector<4x16x16xf32> -> vector<4x16x16xf32>
    "tpu.trace_stop"() : () -> ()
    %59 = vector.shape_cast %12 : vector<16x16xi1> to vector<1x16x16xi1>
    %cst_24 = arith.constant -3.40282347E+38 : f32
    %60 = vector.shape_cast %59 : vector<1x16x16xi1> to vector<1x16x16xi1>
    %61 = vector.broadcast %60 : vector<1x16x16xi1> to vector<4x16x16xi1>
    %62 = vector.broadcast %cst_24 : f32 to vector<4x16x16xf32>
    %63 = arith.select %61, %58, %62 : vector<4x16x16xi1>, vector<4x16x16xf32>
    %cst_25 = arith.constant dense<0xFF800000> : vector<4x16xf32>
    %64 = vector.multi_reduction <maximumf>, %63, %cst_25 [2] : vector<4x16x16xf32> to vector<4x16xf32>
    %65 = vector.shape_cast %64 : vector<4x16xf32> to vector<4x16x1xf32>
    %66 = vector.broadcast %65 : vector<4x16x1xf32> to vector<4x16x16xf32>
    %67 = arith.subf %63, %66 : vector<4x16x16xf32>
    %68 = math.exp %67 : vector<4x16x16xf32>
    %cst_26 = arith.constant dense<0.000000e+00> : vector<4x16xf32>
    %69 = vector.multi_reduction <add>, %68, %cst_26 [2] : vector<4x16x16xf32> to vector<4x16xf32>
    %70 = vector.shape_cast %69 : vector<4x16xf32> to vector<4x16x1xf32>
    %71 = tpu.reciprocal %70 {approx = true} : vector<4x16x1xf32> -> vector<4x16x1xf32>
    %72 = vector.broadcast %71 : vector<4x16x1xf32> to vector<4x16x16xf32>
    %73 = arith.mulf %68, %72 : vector<4x16x16xf32>
    %74 = arith.truncf %73 : vector<4x16x16xf32> to vector<4x16x16xbf16>
    %75 = arith.truncf %55 : vector<4x16x8xf32> to vector<4x16x8xbf16>
    "tpu.trace_start"() <{level = 10 : i32, message = "hqk,hke->hqe"}> : () -> ()
    %cst_27 = arith.constant dense<0.000000e+00> : vector<4x16x8xf32>
    %76 = tpu.matmul %74, %75, %cst_27 {dimension_numbers = #tpu.dot_dimension_numbers<[2], [1], [1], [2], [0, 0, 0, 1, 1, 2], [0], [0]>} : vector<4x16x16xbf16>, vector<4x16x8xbf16>, vector<4x16x8xf32> -> vector<4x16x8xf32>
    "tpu.trace_stop"() : () -> ()
    %77 = tpu.transpose %76, [1, 0, 2] : vector<4x16x8xf32> -> vector<16x4x8xf32>
    %78 = vector.shape_cast %77 : vector<16x4x8xf32> to vector<16x32xf32>
    %79 = arith.truncf %78 : vector<16x32xf32> to vector<16x32xbf16>
    %c0_28 = arith.constant 0 : index
    %c0_29 = arith.constant 0 : index
    %c0_30 = arith.constant 0 : index
    %80 = vector.load %arg8[%c0_28, %c0_29, %c0_30] : memref<1x32x32xbf16, #tpu.memory_space<vmem>>, vector<1x32x32xbf16>
    %81 = vector.shape_cast %80 : vector<1x32x32xbf16> to vector<32x32xbf16>
    %cst_31 = arith.constant dense<0.000000e+00> : vector<16x32xf32>
    %82 = tpu.matmul %79, %81, %cst_31 {dimension_numbers = #tpu.dot_dimension_numbers<[1], [0], [0], [1], [0, 0, 1, 1], [], []>} : vector<16x32xbf16>, vector<32x32xbf16>, vector<16x32xf32> -> vector<16x32xf32>
    %c0_32 = arith.constant 0 : index
    %c0_33 = arith.constant 0 : index
    %c0_34 = arith.constant 0 : index
    %83 = vector.load %arg9[%c0_32, %c0_33, %c0_34] : memref<1x1x32xf32, #tpu.memory_space<vmem>>, vector<1x1x32xf32>
    %84 = vector.shape_cast %83 : vector<1x1x32xf32> to vector<1x32xf32>
    %85 = vector.broadcast %84 : vector<1x32xf32> to vector<16x32xf32>
    %86 = arith.addf %82, %85 : vector<16x32xf32>
    %87 = arith.addf %3, %86 : vector<16x32xf32>
    %c0_35 = arith.constant 0 : index
    %c0_36 = arith.constant 0 : index
    %c0_37 = arith.constant 0 : index
    %88 = vector.load %arg10[%c0_35, %c0_36, %c0_37] : memref<1x1x32xf32, #tpu.memory_space<vmem>>, vector<1x1x32xf32>
    %89 = vector.shape_cast %88 : vector<1x1x32xf32> to vector<1x32xf32>
    %c0_38 = arith.constant 0 : index
    %c0_39 = arith.constant 0 : index
    %c0_40 = arith.constant 0 : index
    %90 = vector.load %arg11[%c0_38, %c0_39, %c0_40] : memref<1x1x32xf32, #tpu.memory_space<vmem>>, vector<1x1x32xf32>
    %91 = vector.shape_cast %90 : vector<1x1x32xf32> to vector<1x32xf32>
    %cst_41 = arith.constant dense<0.000000e+00> : vector<16xf32>
    %92 = vector.multi_reduction <add>, %87, %cst_41 [1] : vector<16x32xf32> to vector<16xf32>
    %93 = vector.shape_cast %92 : vector<16xf32> to vector<16x1xf32>
    %cst_42 = arith.constant 3.200000e+01 : f32
    %94 = vector.broadcast %cst_42 : f32 to vector<16x1xf32>
    %95 = arith.divf %93, %94 : vector<16x1xf32>
    %96 = vector.broadcast %95 : vector<16x1xf32> to vector<16x32xf32>
    %97 = arith.subf %87, %96 : vector<16x32xf32>
    %98 = arith.mulf %97, %97 : vector<16x32xf32>
    %cst_43 = arith.constant dense<0.000000e+00> : vector<16xf32>
    %99 = vector.multi_reduction <add>, %98, %cst_43 [1] : vector<16x32xf32> to vector<16xf32>
    %100 = vector.shape_cast %99 : vector<16xf32> to vector<16x1xf32>
    %cst_44 = arith.constant 3.200000e+01 : f32
    %101 = vector.broadcast %cst_44 : f32 to vector<16x1xf32>
    %102 = arith.divf %100, %101 : vector<16x1xf32>
    %103 = vector.broadcast %95 : vector<16x1xf32> to vector<16x32xf32>
    %104 = arith.subf %87, %103 : vector<16x32xf32>
    %cst_45 = arith.constant 9.99999974E-6 : f32
    %105 = vector.broadcast %cst_45 : f32 to vector<16x1xf32>
    %106 = arith.addf %102, %105 : vector<16x1xf32>
    %107 = math.rsqrt %106 : vector<16x1xf32>
    %108 = vector.broadcast %107 : vector<16x1xf32> to vector<16x32xf32>
    %109 = arith.mulf %104, %108 : vector<16x32xf32>
    %110 = vector.broadcast %89 : vector<1x32xf32> to vector<16x32xf32>
    %111 = arith.mulf %109, %110 : vector<16x32xf32>
    %112 = vector.broadcast %91 : vector<1x32xf32> to vector<16x32xf32>
    %113 = arith.addf %111, %112 : vector<16x32xf32>
    %114 = arith.truncf %113 : vector<16x32xf32> to vector<16x32xbf16>
    %c0_46 = arith.constant 0 : index
    %c0_47 = arith.constant 0 : index
    %c0_48 = arith.constant 0 : index
    %115 = vector.load %arg12[%c0_46, %c0_47, %c0_48] : memref<1x32x128xbf16, #tpu.memory_space<vmem>>, vector<1x32x128xbf16>
    %116 = vector.shape_cast %115 : vector<1x32x128xbf16> to vector<32x128xbf16>
    %cst_49 = arith.constant dense<0.000000e+00> : vector<16x128xf32>
    %117 = tpu.matmul %114, %116, %cst_49 {dimension_numbers = #tpu.dot_dimension_numbers<[1], [0], [0], [1], [0, 0, 1, 1], [], []>} : vector<16x32xbf16>, vector<32x128xbf16>, vector<16x128xf32> -> vector<16x128xf32>
    %c0_50 = arith.constant 0 : index
    %c0_51 = arith.constant 0 : index
    %c0_52 = arith.constant 0 : index
    %118 = vector.load %arg13[%c0_50, %c0_51, %c0_52] : memref<1x1x128xf32, #tpu.memory_space<vmem>>, vector<1x1x128xf32>
    %119 = vector.shape_cast %118 : vector<1x1x128xf32> to vector<1x128xf32>
    %120 = vector.broadcast %119 : vector<1x128xf32> to vector<16x128xf32>
    %121 = arith.addf %117, %120 : vector<16x128xf32>
    %cst_53 = arith.constant 1.702000e+00 : f32
    %122 = vector.broadcast %cst_53 : f32 to vector<16x128xf32>
    %123 = arith.mulf %122, %121 : vector<16x128xf32>
    %124 = arith.negf %123 : vector<16x128xf32>
    %125 = math.exp %124 : vector<16x128xf32>
    %cst_54 = arith.constant 1.000000e+00 : f32
    %126 = vector.broadcast %cst_54 : f32 to vector<16x128xf32>
    %127 = arith.addf %126, %125 : vector<16x128xf32>
    %128 = arith.divf %126, %127 : vector<16x128xf32>
    %129 = arith.mulf %121, %128 : vector<16x128xf32>
    %130 = arith.truncf %129 : vector<16x128xf32> to vector<16x128xbf16>
    %c0_55 = arith.constant 0 : index
    %c0_56 = arith.constant 0 : index
    %c0_57 = arith.constant 0 : index
    %131 = vector.load %arg14[%c0_55, %c0_56, %c0_57] : memref<1x128x32xbf16, #tpu.memory_space<vmem>>, vector<1x128x32xbf16>
    %132 = vector.shape_cast %131 : vector<1x128x32xbf16> to vector<128x32xbf16>
    %cst_58 = arith.constant dense<0.000000e+00> : vector<16x32xf32>
    %133 = tpu.matmul %130, %132, %cst_58 {dimension_numbers = #tpu.dot_dimension_numbers<[1], [0], [0], [1], [0, 0, 1, 1], [], []>} : vector<16x128xbf16>, vector<128x32xbf16>, vector<16x32xf32> -> vector<16x32xf32>
    %c0_59 = arith.constant 0 : index
    %c0_60 = arith.constant 0 : index
    %c0_61 = arith.constant 0 : index
    %134 = vector.load %arg15[%c0_59, %c0_60, %c0_61] : memref<1x1x32xf32, #tpu.memory_space<vmem>>, vector<1x1x32xf32>
    %135 = vector.shape_cast %134 : vector<1x1x32xf32> to vector<1x32xf32>
    %136 = vector.broadcast %135 : vector<1x32xf32> to vector<16x32xf32>
    %137 = arith.addf %133, %136 : vector<16x32xf32>
    %138 = arith.addf %87, %137 : vector<16x32xf32>
    %c0_62 = arith.constant 0 : index
    %c0_63 = arith.constant 0 : index
    %139 = vector.load %arg19[%c0_62, %c0_63] : memref<16x32xf32, #tpu.memory_space<vmem>>, vector<16x32xf32>
    tpu.vector_store %arg19[%c0_62, %c0_63], %138 {strides = array<i32>} : memref<16x32xf32, #tpu.memory_space<vmem>>, vector<16x32xf32>,
    %c1_i32 = arith.constant 1 : i32
    %140 = arith.cmpi eq, %arg1, %c1_i32 : i32
    %141 = arith.extui %140 : i1 to i32
    %c0_i32_64 = arith.constant 0 : i32
    %142 = arith.cmpi ne, %141, %c0_i32_64 : i32
    scf.if %142 {
      %c0_65 = arith.constant 0 : index
      %c0_66 = arith.constant 0 : index
      %143 = vector.load %arg16[%c0_65, %c0_66] : memref<1x32xf32, #tpu.memory_space<vmem>>, vector<1x32xf32>
      %c0_67 = arith.constant 0 : index
      %c0_68 = arith.constant 0 : index
      %144 = vector.load %arg17[%c0_67, %c0_68] : memref<1x32xf32, #tpu.memory_space<vmem>>, vector<1x32xf32>
      %cst_69 = arith.constant dense<0.000000e+00> : vector<16xf32>
      %145 = vector.multi_reduction <add>, %138, %cst_69 [1] : vector<16x32xf32> to vector<16xf32>
      %146 = vector.shape_cast %145 : vector<16xf32> to vector<16x1xf32>
      %cst_70 = arith.constant 3.200000e+01 : f32
      %147 = vector.broadcast %cst_70 : f32 to vector<16x1xf32>
      %148 = arith.divf %146, %147 : vector<16x1xf32>
      %149 = vector.broadcast %148 : vector<16x1xf32> to vector<16x32xf32>
      %150 = arith.subf %138, %149 : vector<16x32xf32>
      %151 = arith.mulf %150, %150 : vector<16x32xf32>
      %cst_71 = arith.constant dense<0.000000e+00> : vector<16xf32>
      %152 = vector.multi_reduction <add>, %151, %cst_71 [1] : vector<16x32xf32> to vector<16xf32>
      %153 = vector.shape_cast %152 : vector<16xf32> to vector<16x1xf32>
      %cst_72 = arith.constant 3.200000e+01 : f32
      %154 = vector.broadcast %cst_72 : f32 to vector<16x1xf32>
      %155 = arith.divf %153, %154 : vector<16x1xf32>
      %156 = vector.broadcast %148 : vector<16x1xf32> to vector<16x32xf32>
      %157 = arith.subf %138, %156 : vector<16x32xf32>
      %cst_73 = arith.constant 9.99999974E-6 : f32
      %158 = vector.broadcast %cst_73 : f32 to vector<16x1xf32>
      %159 = arith.addf %155, %158 : vector<16x1xf32>
      %160 = math.rsqrt %159 : vector<16x1xf32>
      %161 = vector.broadcast %160 : vector<16x1xf32> to vector<16x32xf32>
      %162 = arith.mulf %157, %161 : vector<16x32xf32>
      %163 = vector.broadcast %143 : vector<1x32xf32> to vector<16x32xf32>
      %164 = arith.mulf %162, %163 : vector<16x32xf32>
      %165 = vector.broadcast %144 : vector<1x32xf32> to vector<16x32xf32>
      %166 = arith.addf %164, %165 : vector<16x32xf32>
      %c0_74 = arith.constant 0 : index
      %c0_75 = arith.constant 0 : index
      %c0_76 = arith.constant 0 : index
      %167 = vector.load %arg18[%c0_74, %c0_75, %c0_76] : memref<1x16x32xf32, #tpu.memory_space<vmem>>, vector<1x16x32xf32>
      %168 = vector.shape_cast %167 : vector<1x16x32xf32> to vector<16x32xf32>
      %169 = vector.shape_cast %166 : vector<16x32xf32> to vector<1x16x32xf32>
      tpu.vector_store %arg18[%c0_74, %c0_75, %c0_76], %169 {strides = array<i32>} : memref<1x16x32xf32, #tpu.memory_space<vmem>>, vector<1x16x32xf32>,
    } else {
    }
    return
  }
  func.func @transform_0(%arg0: i32, %arg1: i32) -> (i32, i32, i32) {
    %c0_i32 = arith.constant 0 : i32
    %c0_i32_0 = arith.constant 0 : i32
    %c0_i32_1 = arith.constant 0 : i32
    return %arg0, %c0_i32, %c0_i32_0 : i32, i32, i32
  }
  func.func @transform_1(%arg0: i32, %arg1: i32) -> (i32, i32, i32) {
    %c0_i32 = arith.constant 0 : i32
    %c0_i32_0 = arith.constant 0 : i32
    %c0_i32_1 = arith.constant 0 : i32
    return %arg0, %c0_i32, %c0_i32_0 : i32, i32, i32
  }
  func.func @transform_2(%arg0: i32, %arg1: i32) -> (i32, i32, i32) {
    %c0_i32 = arith.constant 0 : i32
    %c0_i32_0 = arith.constant 0 : i32
    %c0_i32_1 = arith.constant 0 : i32
    return %arg1, %c0_i32, %c0_i32_0 : i32, i32, i32
  }
  func.func @transform_3(%arg0: i32, %arg1: i32) -> (i32, i32, i32) {
    %c0_i32 = arith.constant 0 : i32
    %c0_i32_0 = arith.constant 0 : i32
    %c0_i32_1 = arith.constant 0 : i32
    return %arg1, %c0_i32, %c0_i32_0 : i32, i32, i32
  }
  func.func @transform_4(%arg0: i32, %arg1: i32) -> (i32, i32, i32) {
    %c0_i32 = arith.constant 0 : i32
    %c0_i32_0 = arith.constant 0 : i32
    %c0_i32_1 = arith.constant 0 : i32
    return %arg1, %c0_i32, %c0_i32_0 : i32, i32, i32
  }
  func.func @transform_5(%arg0: i32, %arg1: i32) -> (i32, i32, i32) {
    %c0_i32 = arith.constant 0 : i32
    %c0_i32_0 = arith.constant 0 : i32
    %c0_i32_1 = arith.constant 0 : i32
    return %arg1, %c0_i32, %c0_i32_0 : i32, i32, i32
  }
  func.func @transform_6(%arg0: i32, %arg1: i32) -> (i32, i32, i32) {
    %c0_i32 = arith.constant 0 : i32
    %c0_i32_0 = arith.constant 0 : i32
    %c0_i32_1 = arith.constant 0 : i32
    return %arg1, %c0_i32, %c0_i32_0 : i32, i32, i32
  }
  func.func @transform_7(%arg0: i32, %arg1: i32) -> (i32, i32, i32) {
    %c0_i32 = arith.constant 0 : i32
    %c0_i32_0 = arith.constant 0 : i32
    %c0_i32_1 = arith.constant 0 : i32
    return %arg1, %c0_i32, %c0_i32_0 : i32, i32, i32
  }
  func.func @transform_8(%arg0: i32, %arg1: i32) -> (i32, i32, i32) {
    %c0_i32 = arith.constant 0 : i32
    %c0_i32_0 = arith.constant 0 : i32
    %c0_i32_1 = arith.constant 0 : i32
    return %arg1, %c0_i32, %c0_i32_0 : i32, i32, i32
  }
  func.func @transform_9(%arg0: i32, %arg1: i32) -> (i32, i32, i32) {
    %c0_i32 = arith.constant 0 : i32
    %c0_i32_0 = arith.constant 0 : i32
    %c0_i32_1 = arith.constant 0 : i32
    return %arg1, %c0_i32, %c0_i32_0 : i32, i32, i32
  }
  func.func @transform_10(%arg0: i32, %arg1: i32) -> (i32, i32, i32) {
    %c0_i32 = arith.constant 0 : i32
    %c0_i32_0 = arith.constant 0 : i32
    %c0_i32_1 = arith.constant 0 : i32
    return %arg1, %c0_i32, %c0_i32_0 : i32, i32, i32
  }
  func.func @transform_11(%arg0: i32, %arg1: i32) -> (i32, i32, i32) {
    %c0_i32 = arith.constant 0 : i32
    %c0_i32_0 = arith.constant 0 : i32
    %c0_i32_1 = arith.constant 0 : i32
    return %arg1, %c0_i32, %c0_i32_0 : i32, i32, i32
  }
  func.func @transform_12(%arg0: i32, %arg1: i32) -> (i32, i32, i32) {
    %c0_i32 = arith.constant 0 : i32
    %c0_i32_0 = arith.constant 0 : i32
    %c0_i32_1 = arith.constant 0 : i32
    return %arg1, %c0_i32, %c0_i32_0 : i32, i32, i32
  }
  func.func @transform_13(%arg0: i32, %arg1: i32) -> (i32, i32, i32) {
    %c0_i32 = arith.constant 0 : i32
    %c0_i32_0 = arith.constant 0 : i32
    %c0_i32_1 = arith.constant 0 : i32
    return %arg1, %c0_i32, %c0_i32_0 : i32, i32, i32
  }
  func.func @transform_14(%arg0: i32, %arg1: i32) -> (i32, i32) {
    %c0_i32 = arith.constant 0 : i32
    %c0_i32_0 = arith.constant 0 : i32
    %c0_i32_1 = arith.constant 0 : i32
    return %c0_i32, %c0_i32_0 : i32, i32
  }
  func.func @transform_15(%arg0: i32, %arg1: i32) -> (i32, i32) {
    %c0_i32 = arith.constant 0 : i32
    %c0_i32_0 = arith.constant 0 : i32
    %c0_i32_1 = arith.constant 0 : i32
    return %c0_i32, %c0_i32_0 : i32, i32
  }
  func.func @transform_16(%arg0: i32, %arg1: i32) -> (i32, i32, i32) {
    %c0_i32 = arith.constant 0 : i32
    %c0_i32_0 = arith.constant 0 : i32
    %c0_i32_1 = arith.constant 0 : i32
    return %arg0, %c0_i32, %c0_i32_0 : i32, i32, i32
  }
}

</mosaic_0001>

<llo_original>
// kernel: tpu_custom_call.1
$region0: #{tpu_custom_call.1}
  #allocation0 [shape = 'u32[]', space=smem, size = 0x4, offset = 0x4, fixed_abs, tag = 'smem constant byte address 0x4 - core index']
  #allocation1 [shape = 'u32[72,128]{1,0:T(1,128)}', space=vmem, size = 0x9000, scoped, tag = 'internal scratch']
  #allocation2 [shape = 'f32[16,32]{1,0:T(8,128)}', space=vmem, size = 0x2000, scoped, tag = 'scratch operand']
  %s0 = inlined_call_operand.vmem [shape: f32[2,16,32], index: 0, kind: input, shape index: {}]
  %s1 = inlined_call_operand.vmem [shape: s32[2,1,16], index: 1, kind: input, shape index: {}]
  %s2 = inlined_call_operand.vmem [shape: f32[2,1,32], index: 2, kind: input, shape index: {}]
  %s3 = inlined_call_operand.vmem [shape: f32[2,1,32], index: 3, kind: input, shape index: {}]
  %s4 = inlined_call_operand.vmem [shape: bf16[2,32,96], index: 4, kind: input, shape index: {}]
  %s5 = inlined_call_operand.vmem [shape: f32[2,1,96], index: 5, kind: input, shape index: {}]
  %s6 = inlined_call_operand.vmem [shape: bf16[2,32,32], index: 6, kind: input, shape index: {}]
  %s7 = inlined_call_operand.vmem [shape: f32[2,1,32], index: 7, kind: input, shape index: {}]
  %s8 = inlined_call_operand.vmem [shape: f32[2,1,32], index: 8, kind: input, shape index: {}]
  %s9 = inlined_call_operand.vmem [shape: f32[2,1,32], index: 9, kind: input, shape index: {}]
  %s10 = inlined_call_operand.vmem [shape: bf16[2,32,128], index: 10, kind: input, shape index: {}]
  %s11 = inlined_call_operand.vmem [shape: f32[2,1,128], index: 11, kind: input, shape index: {}]
  %s12 = inlined_call_operand.vmem [shape: bf16[2,128,32], index: 12, kind: input, shape index: {}]
  %s13 = inlined_call_operand.vmem [shape: f32[2,1,32], index: 13, kind: input, shape index: {}]
  %s14 = inlined_call_operand.vmem [shape: f32[1,32], index: 14, kind: input, shape index: {}]
  %s15 = inlined_call_operand.vmem [shape: f32[1,32], index: 15, kind: input, shape index: {}]
  %s16 = inlined_call_operand.hbm [shape: f32[2,16,32], index: 16, kind: output, shape index: {}]
  %s17 = sld [smem:[#allocation0]]
  $region105: #{tpu_custom_call.1} parent=0
    _
  %s19 = ssub.s32 1, %s17
  %s20 = scalar_select 0, %s19, %s17
  $region1: #{tpu_custom_call.1} parent=0
    #allocation3 [shape = 'u8[16384]{0}', space=vmem, size = 0x4000, scoped, tag = 'output window, operand 0']
    #allocation4 [shape = 's32[2]{0}', space=sflag, size = 0x8, scoped, tag = 'scoped memory for tpu_custom_call.1']
    %21 = vsyncpa [#allocation4], 0
    %s22 = scalar_lea.sflag [#allocation4], 1
    %23 = vsyncpa %s22, 0
    loop: start=0, step=1, limit=6
    $region2: #{tpu_custom_call.1} parent=1 // loop_pre_header
      _
    $region3: #{tpu_custom_call.1} parent=1 // loop_header
      %s25 = sphi 0, %s29
      %p26 = scmp.ge.s32.totalorder %s25, 6
      %s32 = sphi 0, %s44
      %s33 = sphi 0, %s40
      %s34 = sphi 0, %s32
      %s35 = sphi 0, %s33
      %s36 = sphi 0, %s34
      %s37 = sphi 0, %s35
      %s47 = sphi 0, %s49
      %s50 = sphi 0, %s47
      %s51 = sphi 0, %s50
      %s67 = sphi 0, %s51
      %s73 = sphi 0, %s75
      %s76 = sphi 0, %s73
      %s77 = sphi 0, %s76
      %s93 = sphi 0, %s77
      %s99 = sphi 0, %s101
      %s102 = sphi 0, %s99
      %s103 = sphi 0, %s102
      %s119 = sphi 0, %s103
      %s125 = sphi 0, %s127
      %s128 = sphi 0, %s125
      %s129 = sphi 0, %s128
      %s145 = sphi 0, %s129
      %s151 = sphi 0, %s153
      %s154 = sphi 0, %s151
      %s155 = sphi 0, %s154
      %s171 = sphi 0, %s155
      %s177 = sphi 0, %s179
      %s180 = sphi 0, %s177
      %s181 = sphi 0, %s180
      %s197 = sphi 0, %s181
      %s203 = sphi 0, %s205
      %s206 = sphi 0, %s203
      %s207 = sphi 0, %s206
      %s223 = sphi 0, %s207
      %s229 = sphi 0, %s231
      %s232 = sphi 0, %s229
      %s233 = sphi 0, %s232
      %s249 = sphi 0, %s233
      %s255 = sphi 0, %s257
      %s258 = sphi 0, %s255
      %s259 = sphi 0, %s258
      %s275 = sphi 0, %s259
      %s281 = sphi 0, %s283
      %s284 = sphi 0, %s281
      %s285 = sphi 0, %s284
      %s301 = sphi 0, %s285
      %s307 = sphi 0, %s309
      %s310 = sphi 0, %s307
      %s311 = sphi 0, %s310
      %s327 = sphi 0, %s311
      %s333 = sphi 0, %s335
      %s336 = sphi 0, %s333
      %s337 = sphi 0, %s336
      %s353 = sphi 0, %s337
      %s359 = sphi 0, %s361
      %s362 = sphi 0, %s359
      %s363 = sphi 0, %s362
      %s379 = sphi 0, %s363
      %s385 = sphi 0, %s387
      %s388 = sphi 0, %s385
      %s389 = sphi 0, %s388
      %s405 = sphi 0, %s389
      %s409 = sphi 0, %s409
      %s411 = sphi 0, %s409
      %s412 = sphi 0, %s411
      %s426 = sphi 0, %s412
      %s430 = sphi 0, %s430
      %s432 = sphi 0, %s430
      %s433 = sphi 0, %s432
      %s447 = sphi 0, %s433
      %s453 = sphi 0, %s455
      %s456 = sphi 0, %s453
      %s457 = sphi 0, %s456
      %s473 = sphi 0, %s457
    $region4: #{tpu_custom_call.1} parent=1 // loop_header_branch
      %28 = sbr.rel (%p26) target = $region8
    $region5: #{tpu_custom_call.1} parent=1 // loop_body
      %s30 = ssub.s32 %s25, 1
      %s31 = ssub.s32 %s25, 2
      %s38 = sadd.s32 1, %s33
      %p39 = scmp.ge.s32.totalorder %s38, 2
      %s40 = scalar_select %p39, 0, %s38
      %s41 = sadd.s32 1, %s32
      %s42 = scalar_select %p39, %s41, %s32
      %p43 = scmp.ge.s32.totalorder %s42, 2
      %s44 = scalar_select %p43, 0, %s42
      %s45 = ssub.s32 %s32, %s44
      %p46 = scmp.eq.s32.totalorder %s45, 0
      %s48 = sadd.s32 %s47, 1
      %s49 = scalar_select %p46, %s47, %s48
      %p52 = pneg %p46
      %p53 = scmp.eq.s32.totalorder %s25, 3
      %p54 = por %p52, %p53
      %p55 = scmp.ne.s32.totalorder %s47, %s50
      %p56 = scmp.eq.s32.totalorder %s25, 0
      %p57 = por %p55, %p56
      %p58 = scmp.ne.s32.totalorder %s47, %s50
      %p59 = scmp.eq.s32.totalorder %s30, 3
      %p60 = por %p58, %p59
      %p61 = scmp.ne.s32.totalorder %s50, %s51
      %p62 = scmp.eq.s32.totalorder %s30, 0
      %p63 = por %p61, %p62
      %p64 = scmp.ne.s32.totalorder %s50, %s51
      %p65 = scmp.eq.s32.totalorder %s31, 3
      %p66 = por %p64, %p65
      %p68 = scmp.ne.s32.totalorder %s51, %s67
      %p69 = scmp.eq.s32.totalorder %s31, 0
      %p70 = por %p68, %p69
      %s71 = ssub.s32 %s32, %s44
      %p72 = scmp.eq.s32.totalorder %s71, 0
      %s74 = sadd.s32 %s73, 1
      %s75 = scalar_select %p72, %s73, %s74
      %p78 = pneg %p72
      %p79 = scmp.eq.s32.totalorder %s25, 3
      %p80 = por %p78, %p79
      %p81 = scmp.ne.s32.totalorder %s73, %s76
      %p82 = scmp.eq.s32.totalorder %s25, 0
      %p83 = por %p81, %p82
      %p84 = scmp.ne.s32.totalorder %s73, %s76
      %p85 = scmp.eq.s32.totalorder %s30, 3
      %p86 = por %p84, %p85
      %p87 = scmp.ne.s32.totalorder %s76, %s77
      %p88 = scmp.eq.s32.totalorder %s30, 0
      %p89 = por %p87, %p88
      %p90 = scmp.ne.s32.totalorder %s76, %s77
      %p91 = scmp.eq.s32.totalorder %s31, 3
      %p92 = por %p90, %p91
      %p94 = scmp.ne.s32.totalorder %s77, %s93
      %p95 = scmp.eq.s32.totalorder %s31, 0
      %p96 = por %p94, %p95
      %s97 = ssub.s32 %s33, %s40
      %p98 = scmp.eq.s32.totalorder %s97, 0
      %s100 = sadd.s32 %s99, 1
      %s101 = scalar_select %p98, %s99, %s100
      %p104 = pneg %p98
      %p105 = scmp.eq.s32.totalorder %s25, 3
      %p106 = por %p104, %p105
      %p107 = scmp.ne.s32.totalorder %s99, %s102
      %p108 = scmp.eq.s32.totalorder %s25, 0
      %p109 = por %p107, %p108
      %p110 = scmp.ne.s32.totalorder %s99, %s102
      %p111 = scmp.eq.s32.totalorder %s30, 3
      %p112 = por %p110, %p111
      %p113 = scmp.ne.s32.totalorder %s102, %s103
      %p114 = scmp.eq.s32.totalorder %s30, 0
      %p115 = por %p113, %p114
      %p116 = scmp.ne.s32.totalorder %s102, %s103
      %p117 = scmp.eq.s32.totalorder %s31, 3
      %p118 = por %p116, %p117
      %p120 = scmp.ne.s32.totalorder %s103, %s119
      %p121 = scmp.eq.s32.totalorder %s31, 0
      %p122 = por %p120, %p121
      %s123 = ssub.s32 %s33, %s40
      %p124 = scmp.eq.s32.totalorder %s123, 0
      %s126 = sadd.s32 %s125, 1
      %s127 = scalar_select %p124, %s125, %s126
      %p130 = pneg %p124
      %p131 = scmp.eq.s32.totalorder %s25, 3
      %p132 = por %p130, %p131
      %p133 = scmp.ne.s32.totalorder %s125, %s128
      %p134 = scmp.eq.s32.totalorder %s25, 0
      %p135 = por %p133, %p134
      %p136 = scmp.ne.s32.totalorder %s125, %s128
      %p137 = scmp.eq.s32.totalorder %s30, 3
      %p138 = por %p136, %p137
      %p139 = scmp.ne.s32.totalorder %s128, %s129
      %p140 = scmp.eq.s32.totalorder %s30, 0
      %p141 = por %p139, %p140
      %p142 = scmp.ne.s32.totalorder %s128, %s129
      %p143 = scmp.eq.s32.totalorder %s31, 3
      %p144 = por %p142, %p143
      %p146 = scmp.ne.s32.totalorder %s129, %s145
      %p147 = scmp.eq.s32.totalorder %s31, 0
      %p148 = por %p146, %p147
      %s149 = ssub.s32 %s33, %s40
      %p150 = scmp.eq.s32.totalorder %s149, 0
      %s152 = sadd.s32 %s151, 1
      %s153 = scalar_select %p150, %s151, %s152
      %p156 = pneg %p150
      %p157 = scmp.eq.s32.totalorder %s25, 3
      %p158 = por %p156, %p157
      %p159 = scmp.ne.s32.totalorder %s151, %s154
      %p160 = scmp.eq.s32.totalorder %s25, 0
      %p161 = por %p159, %p160
      %p162 = scmp.ne.s32.totalorder %s151, %s154
      %p163 = scmp.eq.s32.totalorder %s30, 3
      %p164 = por %p162, %p163
      %p165 = scmp.ne.s32.totalorder %s154, %s155
      %p166 = scmp.eq.s32.totalorder %s30, 0
      %p167 = por %p165, %p166
      %p168 = scmp.ne.s32.totalorder %s154, %s155
      %p169 = scmp.eq.s32.totalorder %s31, 3
      %p170 = por %p168, %p169
      %p172 = scmp.ne.s32.totalorder %s155, %s171
      %p173 = scmp.eq.s32.totalorder %s31, 0
      %p174 = por %p172, %p173
      %s175 = ssub.s32 %s33, %s40
      %p176 = scmp.eq.s32.totalorder %s175, 0
      %s178 = sadd.s32 %s177, 1
      %s179 = scalar_select %p176, %s177, %s178
      %p182 = pneg %p176
      %p183 = scmp.eq.s32.totalorder %s25, 3
      %p184 = por %p182, %p183
      %p185 = scmp.ne.s32.totalorder %s177, %s180
      %p186 = scmp.eq.s32.totalorder %s25, 0
      %p187 = por %p185, %p186
      %p188 = scmp.ne.s32.totalorder %s177, %s180
      %p189 = scmp.eq.s32.totalorder %s30, 3
      %p190 = por %p188, %p189
      %p191 = scmp.ne.s32.totalorder %s180, %s181
      %p192 = scmp.eq.s32.totalorder %s30, 0
      %p193 = por %p191, %p192
      %p194 = scmp.ne.s32.totalorder %s180, %s181
      %p195 = scmp.eq.s32.totalorder %s31, 3
      %p196 = por %p194, %p195
      %p198 = scmp.ne.s32.totalorder %s181, %s197
      %p199 = scmp.eq.s32.totalorder %s31, 0
      %p200 = por %p198, %p199
      %s201 = ssub.s32 %s33, %s40
      %p202 = scmp.eq.s32.totalorder %s201, 0
      %s204 = sadd.s32 %s203, 1
      %s205 = scalar_select %p202, %s203, %s204
      %p208 = pneg %p202
      %p209 = scmp.eq.s32.totalorder %s25, 3
      %p210 = por %p208, %p209
      %p211 = scmp.ne.s32.totalorder %s203, %s206
      %p212 = scmp.eq.s32.totalorder %s25, 0
      %p213 = por %p211, %p212
      %p214 = scmp.ne.s32.totalorder %s203, %s206
      %p215 = scmp.eq.s32.totalorder %s30, 3
      %p216 = por %p214, %p215
      %p217 = scmp.ne.s32.totalorder %s206, %s207
      %p218 = scmp.eq.s32.totalorder %s30, 0
      %p219 = por %p217, %p218
      %p220 = scmp.ne.s32.totalorder %s206, %s207
      %p221 = scmp.eq.s32.totalorder %s31, 3
      %p222 = por %p220, %p221
      %p224 = scmp.ne.s32.totalorder %s207, %s223
      %p225 = scmp.eq.s32.totalorder %s31, 0
      %p226 = por %p224, %p225
      %s227 = ssub.s32 %s33, %s40
      %p228 = scmp.eq.s32.totalorder %s227, 0
      %s230 = sadd.s32 %s229, 1
      %s231 = scalar_select %p228, %s229, %s230
      %p234 = pneg %p228
      %p235 = scmp.eq.s32.totalorder %s25, 3
      %p236 = por %p234, %p235
      %p237 = scmp.ne.s32.totalorder %s229, %s232
      %p238 = scmp.eq.s32.totalorder %s25, 0
      %p239 = por %p237, %p238
      %p240 = scmp.ne.s32.totalorder %s229, %s232
      %p241 = scmp.eq.s32.totalorder %s30, 3
      %p242 = por %p240, %p241
      %p243 = scmp.ne.s32.totalorder %s232, %s233
      %p244 = scmp.eq.s32.totalorder %s30, 0
      %p245 = por %p243, %p244
      %p246 = scmp.ne.s32.totalorder %s232, %s233
      %p247 = scmp.eq.s32.totalorder %s31, 3
      %p248 = por %p246, %p247
      %p250 = scmp.ne.s32.totalorder %s233, %s249
      %p251 = scmp.eq.s32.totalorder %s31, 0
      %p252 = por %p250, %p251
      %s253 = ssub.s32 %s33, %s40
      %p254 = scmp.eq.s32.totalorder %s253, 0
      %s256 = sadd.s32 %s255, 1
      %s257 = scalar_select %p254, %s255, %s256
      %p260 = pneg %p254
      %p261 = scmp.eq.s32.totalorder %s25, 3
      %p262 = por %p260, %p261
      %p263 = scmp.ne.s32.totalorder %s255, %s258
      %p264 = scmp.eq.s32.totalorder %s25, 0
      %p265 = por %p263, %p264
      %p266 = scmp.ne.s32.totalorder %s255, %s258
      %p267 = scmp.eq.s32.totalorder %s30, 3
      %p268 = por %p266, %p267
      %p269 = scmp.ne.s32.totalorder %s258, %s259
      %p270 = scmp.eq.s32.totalorder %s30, 0
      %p271 = por %p269, %p270
      %p272 = scmp.ne.s32.totalorder %s258, %s259
      %p273 = scmp.eq.s32.totalorder %s31, 3
      %p274 = por %p272, %p273
      %p276 = scmp.ne.s32.totalorder %s259, %s275
      %p277 = scmp.eq.s32.totalorder %s31, 0
      %p278 = por %p276, %p277
      %s279 = ssub.s32 %s33, %s40
      %p280 = scmp.eq.s32.totalorder %s279, 0
      %s282 = sadd.s32 %s281, 1
      %s283 = scalar_select %p280, %s281, %s282
      %p286 = pneg %p280
      %p287 = scmp.eq.s32.totalorder %s25, 3
      %p288 = por %p286, %p287
      %p289 = scmp.ne.s32.totalorder %s281, %s284
      %p290 = scmp.eq.s32.totalorder %s25, 0
      %p291 = por %p289, %p290
      %p292 = scmp.ne.s32.totalorder %s281, %s284
      %p293 = scmp.eq.s32.totalorder %s30, 3
      %p294 = por %p292, %p293
      %p295 = scmp.ne.s32.totalorder %s284, %s285
      %p296 = scmp.eq.s32.totalorder %s30, 0
      %p297 = por %p295, %p296
      %p298 = scmp.ne.s32.totalorder %s284, %s285
      %p299 = scmp.eq.s32.totalorder %s31, 3
      %p300 = por %p298, %p299
      %p302 = scmp.ne.s32.totalorder %s285, %s301
      %p303 = scmp.eq.s32.totalorder %s31, 0
      %p304 = por %p302, %p303
      %s305 = ssub.s32 %s33, %s40
      %p306 = scmp.eq.s32.totalorder %s305, 0
      %s308 = sadd.s32 %s307, 1
      %s309 = scalar_select %p306, %s307, %s308
      %p312 = pneg %p306
      %p313 = scmp.eq.s32.totalorder %s25, 3
      %p314 = por %p312, %p313
      %p315 = scmp.ne.s32.totalorder %s307, %s310
      %p316 = scmp.eq.s32.totalorder %s25, 0
      %p317 = por %p315, %p316
      %p318 = scmp.ne.s32.totalorder %s307, %s310
      %p319 = scmp.eq.s32.totalorder %s30, 3
      %p320 = por %p318, %p319
      %p321 = scmp.ne.s32.totalorder %s310, %s311
      %p322 = scmp.eq.s32.totalorder %s30, 0
      %p323 = por %p321, %p322
      %p324 = scmp.ne.s32.totalorder %s310, %s311
      %p325 = scmp.eq.s32.totalorder %s31, 3
      %p326 = por %p324, %p325
      %p328 = scmp.ne.s32.totalorder %s311, %s327
      %p329 = scmp.eq.s32.totalorder %s31, 0
      %p330 = por %p328, %p329
      %s331 = ssub.s32 %s33, %s40
      %p332 = scmp.eq.s32.totalorder %s331, 0
      %s334 = sadd.s32 %s333, 1
      %s335 = scalar_select %p332, %s333, %s334
      %p338 = pneg %p332
      %p339 = scmp.eq.s32.totalorder %s25, 3
      %p340 = por %p338, %p339
      %p341 = scmp.ne.s32.totalorder %s333, %s336
      %p342 = scmp.eq.s32.totalorder %s25, 0
      %p343 = por %p341, %p342
      %p344 = scmp.ne.s32.totalorder %s333, %s336
      %p345 = scmp.eq.s32.totalorder %s30, 3
      %p346 = por %p344, %p345
      %p347 = scmp.ne.s32.totalorder %s336, %s337
      %p348 = scmp.eq.s32.totalorder %s30, 0
      %p349 = por %p347, %p348
      %p350 = scmp.ne.s32.totalorder %s336, %s337
      %p351 = scmp.eq.s32.totalorder %s31, 3
      %p352 = por %p350, %p351
      %p354 = scmp.ne.s32.totalorder %s337, %s353
      %p355 = scmp.eq.s32.totalorder %s31, 0
      %p356 = por %p354, %p355
      %s357 = ssub.s32 %s33, %s40
      %p358 = scmp.eq.s32.totalorder %s357, 0
      %s360 = sadd.s32 %s359, 1
      %s361 = scalar_select %p358, %s359, %s360
      %p364 = pneg %p358
      %p365 = scmp.eq.s32.totalorder %s25, 3
      %p366 = por %p364, %p365
      %p367 = scmp.ne.s32.totalorder %s359, %s362
      %p368 = scmp.eq.s32.totalorder %s25, 0
      %p369 = por %p367, %p368
      %p370 = scmp.ne.s32.totalorder %s359, %s362
      %p371 = scmp.eq.s32.totalorder %s30, 3
      %p372 = por %p370, %p371
      %p373 = scmp.ne.s32.totalorder %s362, %s363
      %p374 = scmp.eq.s32.totalorder %s30, 0
      %p375 = por %p373, %p374
      %p376 = scmp.ne.s32.totalorder %s362, %s363
      %p377 = scmp.eq.s32.totalorder %s31, 3
      %p378 = por %p376, %p377
      %p380 = scmp.ne.s32.totalorder %s363, %s379
      %p381 = scmp.eq.s32.totalorder %s31, 0
      %p382 = por %p380, %p381
      %s383 = ssub.s32 %s33, %s40
      %p384 = scmp.eq.s32.totalorder %s383, 0
      %s386 = sadd.s32 %s385, 1
      %s387 = scalar_select %p384, %s385, %s386
      %p390 = pneg %p384
      %p391 = scmp.eq.s32.totalorder %s25, 3
      %p392 = por %p390, %p391
      %p393 = scmp.ne.s32.totalorder %s385, %s388
      %p394 = scmp.eq.s32.totalorder %s25, 0
      %p395 = por %p393, %p394
      %p396 = scmp.ne.s32.totalorder %s385, %s388
      %p397 = scmp.eq.s32.totalorder %s30, 3
      %p398 = por %p396, %p397
      %p399 = scmp.ne.s32.totalorder %s388, %s389
      %p400 = scmp.eq.s32.totalorder %s30, 0
      %p401 = por %p399, %p400
      %p402 = scmp.ne.s32.totalorder %s388, %s389
      %p403 = scmp.eq.s32.totalorder %s31, 3
      %p404 = por %p402, %p403
      %p406 = scmp.ne.s32.totalorder %s389, %s405
      %p407 = scmp.eq.s32.totalorder %s31, 0
      %p408 = por %p406, %p407
      %s410 = sadd.s32 %s409, 1
      %p413 = scmp.eq.s32.totalorder %s25, 3
      %p414 = scmp.ne.s32.totalorder %s409, %s411
      %p415 = scmp.eq.s32.totalorder %s25, 0
      %p416 = por %p414, %p415
      %p417 = scmp.ne.s32.totalorder %s409, %s411
      %p418 = scmp.eq.s32.totalorder %s30, 3
      %p419 = por %p417, %p418
      %p420 = scmp.ne.s32.totalorder %s411, %s412
      %p421 = scmp.eq.s32.totalorder %s30, 0
      %p422 = por %p420, %p421
      %p423 = scmp.ne.s32.totalorder %s411, %s412
      %p424 = scmp.eq.s32.totalorder %s31, 3
      %p425 = por %p423, %p424
      %p427 = scmp.ne.s32.totalorder %s412, %s426
      %p428 = scmp.eq.s32.totalorder %s31, 0
      %p429 = por %p427, %p428
      %s431 = sadd.s32 %s430, 1
      %p434 = scmp.eq.s32.totalorder %s25, 3
      %p435 = scmp.ne.s32.totalorder %s430, %s432
      %p436 = scmp.eq.s32.totalorder %s25, 0
      %p437 = por %p435, %p436
      %p438 = scmp.ne.s32.totalorder %s430, %s432
      %p439 = scmp.eq.s32.totalorder %s30, 3
      %p440 = por %p438, %p439
      %p441 = scmp.ne.s32.totalorder %s432, %s433
      %p442 = scmp.eq.s32.totalorder %s30, 0
      %p443 = por %p441, %p442
      %p444 = scmp.ne.s32.totalorder %s432, %s433
      %p445 = scmp.eq.s32.totalorder %s31, 3
      %p446 = por %p444, %p445
      %p448 = scmp.ne.s32.totalorder %s433, %s447
      %p449 = scmp.eq.s32.totalorder %s31, 0
      %p450 = por %p448, %p449
      %s451 = ssub.s32 %s32, %s44
      %p452 = scmp.eq.s32.totalorder %s451, 0
      %s454 = sadd.s32 %s453, 1
      %s455 = scalar_select %p452, %s453, %s454
      %p458 = pneg %p452
      %p459 = scmp.eq.s32.totalorder %s25, 3
      %p460 = por %p458, %p459
      %p461 = scmp.ne.s32.totalorder %s453, %s456
      %p462 = scmp.eq.s32.totalorder %s25, 0
      %p463 = por %p461, %p462
      %p464 = scmp.ne.s32.totalorder %s453, %s456
      %p465 = scmp.eq.s32.totalorder %s30, 3
      %p466 = por %p464, %p465
      %p467 = scmp.ne.s32.totalorder %s456, %s457
      %p468 = scmp.eq.s32.totalorder %s30, 0
      %p469 = por %p467, %p468
      %p470 = scmp.ne.s32.totalorder %s456, %s457
      %p471 = scmp.eq.s32.totalorder %s31, 3
      %p472 = por %p470, %p471
      %p474 = scmp.ne.s32.totalorder %s457, %s473
      %p475 = scmp.eq.s32.totalorder %s31, 0
      %p476 = por %p474, %p475
      %p477 = scmp.le.s32.totalorder 1, %s25
      %p478 = scmp.lt.s32.totalorder %s25, 5
      %p479 = pnand %p477, %p478
      %p480 = pneg %p479
      // Predicated region
      $region9: #{tpu_custom_call.1} parent=5 // pred_check
        _
      $region10: #{tpu_custom_call.1} parent=5 // pred_check_branch
        %482 = sbr.rel (%p479) target = $region12
      $region11: #{tpu_custom_call.1} parent=5 // pred_region
        %s483 = ssub.s32 %s25, 1
        // Predicated region
        $region13: #{tpu_custom_call.1} parent=11 // pred_check
          %p484 = pneg %p422
        $region14: #{tpu_custom_call.1} parent=11 // pred_check_branch
          %486 = sbr.rel (%p484) target = $region16
        $region15: #{tpu_custom_call.1} parent=11 // pred_region
          _
        $region16: #{tpu_custom_call.1} parent=11 // pred_fallthru
          _
        // Predicated region
        $region17: #{tpu_custom_call.1} parent=11 // pred_check
          %p487 = pneg %p443
        $region18: #{tpu_custom_call.1} parent=11 // pred_check_branch
          %489 = sbr.rel (%p487) target = $region20
        $region19: #{tpu_custom_call.1} parent=11 // pred_region
          _
        $region20: #{tpu_custom_call.1} parent=11 // pred_fallthru
          _
      $region12: #{tpu_custom_call.1} parent=5 // pred_fallthru
        _
      %p490 = scmp.lt.s32.totalorder %s25, 4
      // Predicated region
      $region21: #{tpu_custom_call.1} parent=5 // pred_check
        %p491 = pneg %p490
      $region22: #{tpu_custom_call.1} parent=5 // pred_check_branch
        %493 = sbr.rel (%p491) target = $region24
      $region23: #{tpu_custom_call.1} parent=5 // pred_region
        // Predicated region
        $region25: #{tpu_custom_call.1} parent=23 // pred_check
          %p494 = pneg %p57
        $region26: #{tpu_custom_call.1} parent=23 // pred_check_branch
          %496 = sbr.rel (%p494) target = $region28
        $region27: #{tpu_custom_call.1} parent=23 // pred_region
          %p497 = scmp.lt.s32.totalorder %s32, 1
          %s498 = scalar_select %p497, %s32, 1
          %s499 = smul.addr %s498, 2
          %s500 = smul.addr %s499, 8
          %s501 = scalar_lea.vmem %s0, %s500
        $region28: #{tpu_custom_call.1} parent=23 // pred_fallthru
          _
        // Predicated region
        $region29: #{tpu_custom_call.1} parent=23 // pred_check
          %p502 = pneg %p83
        $region30: #{tpu_custom_call.1} parent=23 // pred_check_branch
          %504 = sbr.rel (%p502) target = $region32
        $region31: #{tpu_custom_call.1} parent=23 // pred_region
          %p505 = scmp.lt.s32.totalorder %s32, 1
          %s506 = scalar_select %p505, %s32, 1
          %s507 = scalar_lea.vmem %s1, %s506
        $region32: #{tpu_custom_call.1} parent=23 // pred_fallthru
          _
        // Predicated region
        $region33: #{tpu_custom_call.1} parent=23 // pred_check
          %p508 = pneg %p109
        $region34: #{tpu_custom_call.1} parent=23 // pred_check_branch
          %510 = sbr.rel (%p508) target = $region36
        $region35: #{tpu_custom_call.1} parent=23 // pred_region
          %p511 = scmp.lt.s32.totalorder %s33, 1
          %s512 = scalar_select %p511, %s33, 1
          %s513 = scalar_lea.vmem %s2, %s512
        $region36: #{tpu_custom_call.1} parent=23 // pred_fallthru
          _
        // Predicated region
        $region37: #{tpu_custom_call.1} parent=23 // pred_check
          %p514 = pneg %p135
        $region38: #{tpu_custom_call.1} parent=23 // pred_check_branch
          %516 = sbr.rel (%p514) target = $region40
        $region39: #{tpu_custom_call.1} parent=23 // pred_region
          %p517 = scmp.lt.s32.totalorder %s33, 1
          %s518 = scalar_select %p517, %s33, 1
          %s519 = scalar_lea.vmem %s3, %s518
        $region40: #{tpu_custom_call.1} parent=23 // pred_fallthru
          _
        // Predicated region
        $region41: #{tpu_custom_call.1} parent=23 // pred_check
          %p520 = pneg %p161
        $region42: #{tpu_custom_call.1} parent=23 // pred_check_branch
          %522 = sbr.rel (%p520) target = $region44
        $region43: #{tpu_custom_call.1} parent=23 // pred_region
          %p523 = scmp.lt.s32.totalorder %s33, 1
          %s524 = scalar_select %p523, %s33, 1
          %s525 = smul.addr %s524, 4
          %s526 = smul.addr %s525, 4
          %s527 = scalar_lea.vmem %s4, %s526
        $region44: #{tpu_custom_call.1} parent=23 // pred_fallthru
          _
        // Predicated region
        $region45: #{tpu_custom_call.1} parent=23 // pred_check
          %p528 = pneg %p187
        $region46: #{tpu_custom_call.1} parent=23 // pred_check_branch
          %530 = sbr.rel (%p528) target = $region48
        $region47: #{tpu_custom_call.1} parent=23 // pred_region
          %p531 = scmp.lt.s32.totalorder %s33, 1
          %s532 = scalar_select %p531, %s33, 1
          %s533 = scalar_lea.vmem %s5, %s532
        $region48: #{tpu_custom_call.1} parent=23 // pred_fallthru
          _
        // Predicated region
        $region49: #{tpu_custom_call.1} parent=23 // pred_check
          %p534 = pneg %p213
        $region50: #{tpu_custom_call.1} parent=23 // pred_check_branch
          %536 = sbr.rel (%p534) target = $region52
        $region51: #{tpu_custom_call.1} parent=23 // pred_region
          %p537 = scmp.lt.s32.totalorder %s33, 1
          %s538 = scalar_select %p537, %s33, 1
          %s539 = smul.addr %s538, 4
          %s540 = smul.addr %s539, 4
          %s541 = scalar_lea.vmem %s6, %s540
        $region52: #{tpu_custom_call.1} parent=23 // pred_fallthru
          _
        // Predicated region
        $region53: #{tpu_custom_call.1} parent=23 // pred_check
          %p542 = pneg %p239
        $region54: #{tpu_custom_call.1} parent=23 // pred_check_branch
          %544 = sbr.rel (%p542) target = $region56
        $region55: #{tpu_custom_call.1} parent=23 // pred_region
          %p545 = scmp.lt.s32.totalorder %s33, 1
          %s546 = scalar_select %p545, %s33, 1
          %s547 = scalar_lea.vmem %s7, %s546
        $region56: #{tpu_custom_call.1} parent=23 // pred_fallthru
          _
        // Predicated region
        $region57: #{tpu_custom_call.1} parent=23 // pred_check
          %p548 = pneg %p265
        $region58: #{tpu_custom_call.1} parent=23 // pred_check_branch
          %550 = sbr.rel (%p548) target = $region60
        $region59: #{tpu_custom_call.1} parent=23 // pred_region
          %p551 = scmp.lt.s32.totalorder %s33, 1
          %s552 = scalar_select %p551, %s33, 1
          %s553 = scalar_lea.vmem %s8, %s552
        $region60: #{tpu_custom_call.1} parent=23 // pred_fallthru
          _
        // Predicated region
        $region61: #{tpu_custom_call.1} parent=23 // pred_check
          %p554 = pneg %p291
        $region62: #{tpu_custom_call.1} parent=23 // pred_check_branch
          %556 = sbr.rel (%p554) target = $region64
        $region63: #{tpu_custom_call.1} parent=23 // pred_region
          %p557 = scmp.lt.s32.totalorder %s33, 1
          %s558 = scalar_select %p557, %s33, 1
          %s559 = scalar_lea.vmem %s9, %s558
        $region64: #{tpu_custom_call.1} parent=23 // pred_fallthru
          _
        // Predicated region
        $region65: #{tpu_custom_call.1} parent=23 // pred_check
          %p560 = pneg %p317
        $region66: #{tpu_custom_call.1} parent=23 // pred_check_branch
          %562 = sbr.rel (%p560) target = $region68
        $region67: #{tpu_custom_call.1} parent=23 // pred_region
          %p563 = scmp.lt.s32.totalorder %s33, 1
          %s564 = scalar_select %p563, %s33, 1
          %s565 = smul.addr %s564, 4
          %s566 = smul.addr %s565, 4
          %s567 = scalar_lea.vmem %s10, %s566
        $region68: #{tpu_custom_call.1} parent=23 // pred_fallthru
          _
        // Predicated region
        $region69: #{tpu_custom_call.1} parent=23 // pred_check
          %p568 = pneg %p343
        $region70: #{tpu_custom_call.1} parent=23 // pred_check_branch
          %570 = sbr.rel (%p568) target = $region72
        $region71: #{tpu_custom_call.1} parent=23 // pred_region
          %p571 = scmp.lt.s32.totalorder %s33, 1
          %s572 = scalar_select %p571, %s33, 1
          %s573 = scalar_lea.vmem %s11, %s572
        $region72: #{tpu_custom_call.1} parent=23 // pred_fallthru
          _
        // Predicated region
        $region73: #{tpu_custom_call.1} parent=23 // pred_check
          %p574 = pneg %p369
        $region74: #{tpu_custom_call.1} parent=23 // pred_check_branch
          %576 = sbr.rel (%p574) target = $region76
        $region75: #{tpu_custom_call.1} parent=23 // pred_region
          %p577 = scmp.lt.s32.totalorder %s33, 1
          %s578 = scalar_select %p577, %s33, 1
          %s579 = smul.addr %s578, 16
          %s580 = smul.addr %s579, 4
          %s581 = scalar_lea.vmem %s12, %s580
        $region76: #{tpu_custom_call.1} parent=23 // pred_fallthru
          _
        // Predicated region
        $region77: #{tpu_custom_call.1} parent=23 // pred_check
          %p582 = pneg %p395
        $region78: #{tpu_custom_call.1} parent=23 // pred_check_branch
          %584 = sbr.rel (%p582) target = $region80
        $region79: #{tpu_custom_call.1} parent=23 // pred_region
          %p585 = scmp.lt.s32.totalorder %s33, 1
          %s586 = scalar_select %p585, %s33, 1
          %s587 = scalar_lea.vmem %s13, %s586
        $region80: #{tpu_custom_call.1} parent=23 // pred_fallthru
          _
      $region24: #{tpu_custom_call.1} parent=5 // pred_fallthru
        _
      %p588 = scmp.le.s32.totalorder 1, %s25
      %p589 = scmp.lt.s32.totalorder %s25, 5
      %p590 = pnand %p588, %p589
      %p591 = pneg %p590
      // Predicated region
      $region81: #{tpu_custom_call.1} parent=5 // pred_check
        _
      $region82: #{tpu_custom_call.1} parent=5 // pred_check_branch
        %593 = sbr.rel (%p590) target = $region84
      $region83: #{tpu_custom_call.1} parent=5 // pred_region
        %s594 = ssub.s32 %s25, 1
        %p595 = scmp.lt.s32.totalorder %s34, 1
        %s596 = scalar_select %p595, %s34, 1
        %s597 = smul.addr %s596, 2
        %s598 = smul.addr %s597, 8
        %s599 = scalar_lea.vmem %s0, %s598
        %p600 = pneg %p63
        %p601 = pneg %p60
        %p602 = scmp.lt.s32.totalorder %s34, 1
        %s603 = scalar_select %p602, %s34, 1
        %s604 = scalar_lea.vmem %s1, %s603
        %p605 = pneg %p89
        %p606 = pneg %p86
        %p607 = scmp.lt.s32.totalorder %s35, 1
        %s608 = scalar_select %p607, %s35, 1
        %s609 = scalar_lea.vmem %s2, %s608
        %p610 = pneg %p115
        %p611 = pneg %p112
        %p612 = scmp.lt.s32.totalorder %s35, 1
        %s613 = scalar_select %p612, %s35, 1
        %s614 = scalar_lea.vmem %s3, %s613
        %p615 = pneg %p141
        %p616 = pneg %p138
        %p617 = scmp.lt.s32.totalorder %s35, 1
        %s618 = scalar_select %p617, %s35, 1
        %s619 = smul.addr %s618, 4
        %s620 = smul.addr %s619, 4
        %s621 = scalar_lea.vmem %s4, %s620
        %p622 = pneg %p167
        %p623 = pneg %p164
        %p624 = scmp.lt.s32.totalorder %s35, 1
        %s625 = scalar_select %p624, %s35, 1
        %s626 = scalar_lea.vmem %s5, %s625
        %p627 = pneg %p193
        %p628 = pneg %p190
        %p629 = scmp.lt.s32.totalorder %s35, 1
        %s630 = scalar_select %p629, %s35, 1
        %s631 = smul.addr %s630, 4
        %s632 = smul.addr %s631, 4
        %s633 = scalar_lea.vmem %s6, %s632
        %p634 = pneg %p219
        %p635 = pneg %p216
        %p636 = scmp.lt.s32.totalorder %s35, 1
        %s637 = scalar_select %p636, %s35, 1
        %s638 = scalar_lea.vmem %s7, %s637
        %p639 = pneg %p245
        %p640 = pneg %p242
        %p641 = scmp.lt.s32.totalorder %s35, 1
        %s642 = scalar_select %p641, %s35, 1
        %s643 = scalar_lea.vmem %s8, %s642
        %p644 = pneg %p271
        %p645 = pneg %p268
        %p646 = scmp.lt.s32.totalorder %s35, 1
        %s647 = scalar_select %p646, %s35, 1
        %s648 = scalar_lea.vmem %s9, %s647
        %p649 = pneg %p297
        %p650 = pneg %p294
        %p651 = scmp.lt.s32.totalorder %s35, 1
        %s652 = scalar_select %p651, %s35, 1
        %s653 = smul.addr %s652, 4
        %s654 = smul.addr %s653, 4
        %s655 = scalar_lea.vmem %s10, %s654
        %p656 = pneg %p323
        %p657 = pneg %p320
        %p658 = scmp.lt.s32.totalorder %s35, 1
        %s659 = scalar_select %p658, %s35, 1
        %s660 = scalar_lea.vmem %s11, %s659
        %p661 = pneg %p349
        %p662 = pneg %p346
        %p663 = scmp.lt.s32.totalorder %s35, 1
        %s664 = scalar_select %p663, %s35, 1
        %s665 = smul.addr %s664, 16
        %s666 = smul.addr %s665, 4
        %s667 = scalar_lea.vmem %s12, %s666
        %p668 = pneg %p375
        %p669 = pneg %p372
        %p670 = scmp.lt.s32.totalorder %s35, 1
        %s671 = scalar_select %p670, %s35, 1
        %s672 = scalar_lea.vmem %s13, %s671
        %p673 = pneg %p401
        %p674 = pneg %p398
        %p675 = pneg %p422
        %p676 = pneg %p419
        %p677 = pneg %p443
        %p678 = pneg %p440
        %p679 = pneg %p469
        %p680 = pneg %p466
        %s681 = sand.u32 %s456, 1
        %s682 = scalar_lea.sflag [#allocation4], %s681
        %s683 = sand.u32 %s456, 1
        %s684 = smul.addr %s683, 16
        %s685 = scalar_lea.vmem [#allocation3], %s684
        %p686 = scmp.lt.s32.totalorder %s34, 1
        %s687 = scalar_select %p686, %s34, 1
        %s688 = smul.addr %s687, 2
        %s689 = smul.addr %s688, 8
        %s690 = scalar_lea.vmem %s0, %s689
        %p691 = scmp.lt.s32.totalorder %s34, 1
        %s692 = scalar_select %p691, %s34, 1
        %s693 = scalar_lea.vmem %s1, %s692
        %p694 = scmp.lt.s32.totalorder %s35, 1
        %s695 = scalar_select %p694, %s35, 1
        %s696 = scalar_lea.vmem %s2, %s695
        %p697 = scmp.lt.s32.totalorder %s35, 1
        %s698 = scalar_select %p697, %s35, 1
        %s699 = scalar_lea.vmem %s3, %s698
        %p700 = scmp.lt.s32.totalorder %s35, 1
        %s701 = scalar_select %p700, %s35, 1
        %s702 = smul.addr %s701, 4
        %s703 = smul.addr %s702, 4
        %s704 = scalar_lea.vmem %s4, %s703
        %p705 = scmp.lt.s32.totalorder %s35, 1
        %s706 = scalar_select %p705, %s35, 1
        %s707 = scalar_lea.vmem %s5, %s706
        %p708 = scmp.lt.s32.totalorder %s35, 1
        %s709 = scalar_select %p708, %s35, 1
        %s710 = smul.addr %s709, 4
        %s711 = smul.addr %s710, 4
        %s712 = scalar_lea.vmem %s6, %s711
        %p713 = scmp.lt.s32.totalorder %s35, 1
        %s714 = scalar_select %p713, %s35, 1
        %s715 = scalar_lea.vmem %s7, %s714
        %p716 = scmp.lt.s32.totalorder %s35, 1
        %s717 = scalar_select %p716, %s35, 1
        %s718 = scalar_lea.vmem %s8, %s717
        %p719 = scmp.lt.s32.totalorder %s35, 1
        %s720 = scalar_select %p719, %s35, 1
        %s721 = scalar_lea.vmem %s9, %s720
        %p722 = scmp.lt.s32.totalorder %s35, 1
        %s723 = scalar_select %p722, %s35, 1
        %s724 = smul.addr %s723, 4
        %s725 = smul.addr %s724, 4
        %s726 = scalar_lea.vmem %s10, %s725
        %p727 = scmp.lt.s32.totalorder %s35, 1
        %s728 = scalar_select %p727, %s35, 1
        %s729 = scalar_lea.vmem %s11, %s728
        %p730 = scmp.lt.s32.totalorder %s35, 1
        %s731 = scalar_select %p730, %s35, 1
        %s732 = smul.addr %s731, 16
        %s733 = smul.addr %s732, 4
        %s734 = scalar_lea.vmem %s12, %s733
        %p735 = scmp.lt.s32.totalorder %s35, 1
        %s736 = scalar_select %p735, %s35, 1
        %s737 = scalar_lea.vmem %s13, %s736
        %p739 = scmp.eq.s32.totalorder %s35, 0
        // Predicated region
        $region85: #{tpu_custom_call.1} parent=83 // pred_check
          %p740 = pneg %p739
        $region86: #{tpu_custom_call.1} parent=83 // pred_check_branch
          %742 = sbr.rel (%p740) target = $region88
        $region87: #{tpu_custom_call.1} parent=83 // pred_region
          %v743 = vld [vmem:[%s690] sm:$0xff]
          %v744 = vld [vmem:[%s690 + $0x8] sm:$0xff]
          %vm745 = vcmask 261120
          %746 = vst.msk [vmem:[#allocation2] sm:$0xff] %vm745, %v743
          %747 = vst.msk [vmem:[#allocation2 + $0x8] sm:$0xff] %vm745, %v744
        $region88: #{tpu_custom_call.1} parent=83 // pred_fallthru
          _
        %v748 = vld [vmem:[#allocation2] sm:$0xff]
        %v749 = vld [vmem:[#allocation2 + $0x8] sm:$0xff]
        %v750 = vld [vmem:[%s693] sm:$0x1]
        %v751 = vlaneseq
        %v752 = vshrl.u32 %v751, 7
        %v753 = vadd.s32 %v752, 8
        %v754 = vlaneseq
        %v755 = vand.u32 %v754, 127
        %vm756 = vcmp.le.s32.totalorder %v755, %v752
        %vm757 = vcmp.le.s32.totalorder %v755, %v753
        %vm758 = vcmp.gt.s32.totalorder %v750, 0
        %v759 = vsel %vm758, 1, 0
        %v760 = vperm.slane %v759, 0
        %vm761 = vcmp.eq.s32.totalorder %v760, 1
        %vm762 = vmand %vm756, %vm761
        %vm763 = vmand %vm757, %vm761
        %v764 = vld [vmem:[%s696] sm:$0x1]
        %v765 = vld [vmem:[%s699] sm:$0x1]
        %vm766 = vcmask 261120
        %v767 = vsel %vm766, %v748, 0.0
        %768 = vadd.xlane.f32.xlu0 %v767
        %v769 = vpop.xlane.xlu0 %768
        %v770 = vsel %vm766, %v749, 0.0
        %771 = vadd.xlane.f32.xlu0 %v770
        %v772 = vpop.xlane.xlu0 %771
        %v773 = vrcp.pop 32.0
        %v774 = vmul.f32 32.0, %v773
        %v775 = vsub.f32 1.0, %v774
        %v776 = vmul.f32 %v773, %v775
        %v777 = vadd.f32 %v773, %v776
        %vm778 = vweird.f32 %v773
        %v779 = vsel %vm778, %v773, %v777
        %v780 = vmul.f32 %v769, %v779
        %v781 = vmul.f32 %v772, %v779
        %v782 = vsub.f32 %v748, %v780
        %v783 = vsub.f32 %v749, %v781
        %v784 = vmul.f32 %v782, %v782
        %v785 = vmul.f32 %v783, %v783
        %v786 = vsel %vm766, %v784, 0.0
        %787 = vadd.xlane.f32.xlu0 %v786
        %v788 = vpop.xlane.xlu0 %787
        %v789 = vsel %vm766, %v785, 0.0
        %790 = vadd.xlane.f32.xlu0 %v789
        %v791 = vpop.xlane.xlu0 %790
        %v792 = vmul.f32 %v788, %v779
        %v793 = vmul.f32 %v791, %v779
        %v794 = vadd.f32 %v792, 1e-05
        %v795 = vadd.f32 %v793, 1e-05
        %v796 = vrsqrt.pop %v794
        %v797 = vmul.f32 %v796, %v794
        %v798 = vmul.f32 %v797, %v796
        %v799 = vmul.f32 0.5, %v798
        %v800 = vsub.f32 1.5, %v799
        %v801 = vmul.f32 %v796, %v800
        %vm802 = vweird.f32 %v794
        %vm803 = vweird.f32 %v796
        %vm804 = vmor %vm802, %vm803
        %v805 = vsel %vm804, %v796, %v801
        %v806 = vrsqrt.pop %v795
        %v807 = vmul.f32 %v806, %v795
        %v808 = vmul.f32 %v807, %v806
        %v809 = vmul.f32 0.5, %v808
        %v810 = vsub.f32 1.5, %v809
        %v811 = vmul.f32 %v806, %v810
        %vm812 = vweird.f32 %v795
        %vm813 = vweird.f32 %v806
        %vm814 = vmor %vm812, %vm813
        %v815 = vsel %vm814, %v806, %v811
        %v816 = vmul.f32 %v782, %v805
        %v817 = vmul.f32 %v783, %v815
        %v819 = vperm.slane %v764, 0
        %v821 = vmul.f32 %v816, %v819
        %v822 = vmul.f32 %v817, %v819
        %v824 = vperm.slane %v765, 0
        %v826 = vadd.f32 %v821, %v824
        %v827 = vadd.f32 %v822, %v824
        %v828 = vpack.c.bf16 %v827, %v826
        %v829 = vld [vmem:[%s704] sm:$0xf]
        %v830 = vld [vmem:[%s704 + $0x4] sm:$0xf]
        %v831 = vld [vmem:[%s704 + $0x8] sm:$0xf]
        %v832 = vld [vmem:[%s704 + $0xc] sm:$0xf]
        %v833 = vld [vmem:[%s707] sm:$0x1]
        %v835 = vperm.slane %v833, 0
        %v841 = vunpack.c.l.b16 %v829
        %v842 = vunpack.c.l.b16 %v830
        %v843 = vunpack.c.l.b16 %v831
        %v844 = vunpack.c.l.b16 %v832
        %v845 = vpack.c.b16 %v842, %v841
        %v846 = vpack.c.b16 %v844, %v843
        %v850 = vsel %vm766, %v828, 0
        %852 = vmatpush.bf16.msra.mxu0 0
        %853 = vmatpush.bf16.msra.mxu0 0
        %854 = vmatpush.bf16.msra.mxu0 0
        %855 = vmatpush.bf16.msra.mxu0 0
        %856 = vmatpush.bf16.msra.mxu0 0
        %857 = vmatpush.bf16.msra.mxu0 0
        %858 = vmatpush.bf16.msra.mxu0 %v846
        %859 = vmatpush.bf16.msra.mxu0 %v845
        %860 = vmatmul.bf16.gmra.mxu0 %v850
        %v861 = vpop.f32.mrf.mxu0
        %v862 = vadd.f32 %v835, %v861
        %v863 = vpop.f32.mrf.mxu0
        %v864 = vadd.f32 %v835, %v863
        %865 = vdwg.mxu0
        %868 = vrot.lane.b32.xlu0 %v862, 120
        %v869 = vpop.permute.xlu0 %868
        %870 = vrot.lane.b32.xlu0 %v864, 120
        %v871 = vpop.permute.xlu0 %870
        %874 = vrot.lane.b32.xlu0 %v862, 112
        %v875 = vpop.permute.xlu0 %874
        %876 = vrot.lane.b32.xlu0 %v864, 112
        %v877 = vpop.permute.xlu0 %876
        %880 = vrot.lane.b32.xlu0 %v862, 104
        %v881 = vpop.permute.xlu0 %880
        %882 = vrot.lane.b32.xlu0 %v864, 104
        %v883 = vpop.permute.xlu0 %882
        %v886 = vrot.slane %v875, 4
        %vm887 = vcmask 1047556
        %v888 = vsel %vm887, %v886, %v862
        %v889 = vrot.slane %v862, 4
        %v890 = vsel %vm887, %v875, %v889
        %v892 = vunpack.c.l.s4 1983009808
        %v893 = vunpack.c.0.s8 %v892
        %v894 = vperm.slane %v888, %v893
        %v896 = vunpack.c.l.s4 1983009808
        %v897 = vunpack.c.0.s8 %v896
        %v898 = vperm.slane %v890, %v897
        %v899 = vrot.slane %v881, 4
        %v900 = vsel %vm887, %v899, %v869
        %v901 = vrot.slane %v869, 4
        %v902 = vsel %vm887, %v881, %v901
        %v904 = vunpack.c.l.s4 1983009808
        %v905 = vunpack.c.0.s8 %v904
        %v906 = vperm.slane %v900, %v905
        %v908 = vunpack.c.l.s4 1983009808
        %v909 = vunpack.c.0.s8 %v908
        %v910 = vperm.slane %v902, %v909
        %v911 = vrot.slane %v906, 4
        %v912 = vsel %vm887, %v911, %v894
        %v913 = vrot.slane %v894, 4
        %v914 = vsel %vm887, %v906, %v913
        %v916 = vunpack.c.l.s4 1934713408
        %v917 = vunpack.c.0.s8 %v916
        %v918 = vperm.slane %v912, %v917
        %v920 = vunpack.c.l.s4 1934713408
        %v921 = vunpack.c.0.s8 %v920
        %v922 = vperm.slane %v914, %v921
        %v923 = vrot.slane %v910, 4
        %v924 = vsel %vm887, %v923, %v898
        %v925 = vrot.slane %v898, 4
        %v926 = vsel %vm887, %v910, %v925
        %v928 = vunpack.c.l.s4 1934713408
        %v929 = vunpack.c.0.s8 %v928
        %v930 = vperm.slane %v924, %v929
        %v932 = vunpack.c.l.s4 1934713408
        %v933 = vunpack.c.0.s8 %v932
        %v934 = vperm.slane %v926, %v933
        %v935 = vrot.slane %v918, 4
        %v936 = vsel %vm887, 0.0, %v935
        %v937 = vrot.slane %v922, 4
        %v938 = vsel %vm887, 0.0, %v937
        %v939 = vrot.slane %v930, 4
        %v940 = vsel %vm887, 0.0, %v939
        %v941 = vrot.slane %v934, 4
        %v942 = vsel %vm887, 0.0, %v941
        %v943 = vrot.slane %v877, 4
        %v944 = vsel %vm887, %v943, %v864
        %v945 = vrot.slane %v864, 4
        %v946 = vsel %vm887, %v877, %v945
        %v948 = vunpack.c.l.s4 1983009808
        %v949 = vunpack.c.0.s8 %v948
        %v950 = vperm.slane %v944, %v949
        %v952 = vunpack.c.l.s4 1983009808
        %v953 = vunpack.c.0.s8 %v952
        %v954 = vperm.slane %v946, %v953
        %v955 = vrot.slane %v883, 4
        %v956 = vsel %vm887, %v955, %v871
        %v957 = vrot.slane %v871, 4
        %v958 = vsel %vm887, %v883, %v957
        %v960 = vunpack.c.l.s4 1983009808
        %v961 = vunpack.c.0.s8 %v960
        %v962 = vperm.slane %v956, %v961
        %v964 = vunpack.c.l.s4 1983009808
        %v965 = vunpack.c.0.s8 %v964
        %v966 = vperm.slane %v958, %v965
        %v967 = vrot.slane %v962, 4
        %v968 = vsel %vm887, %v967, %v950
        %v969 = vrot.slane %v950, 4
        %v970 = vsel %vm887, %v962, %v969
        %v972 = vunpack.c.l.s4 1934713408
        %v973 = vunpack.c.0.s8 %v972
        %v974 = vperm.slane %v968, %v973
        %v976 = vunpack.c.l.s4 1934713408
        %v977 = vunpack.c.0.s8 %v976
        %v978 = vperm.slane %v970, %v977
        %v979 = vrot.slane %v966, 4
        %v980 = vsel %vm887, %v979, %v954
        %v981 = vrot.slane %v954, 4
        %v982 = vsel %vm887, %v966, %v981
        %v984 = vunpack.c.l.s4 1934713408
        %v985 = vunpack.c.0.s8 %v984
        %v986 = vperm.slane %v980, %v985
        %v988 = vunpack.c.l.s4 1934713408
        %v989 = vunpack.c.0.s8 %v988
        %v990 = vperm.slane %v982, %v989
        %v991 = vrot.slane %v974, 4
        %v992 = vsel %vm887, 0.0, %v991
        %v993 = vrot.slane %v978, 4
        %v994 = vsel %vm887, 0.0, %v993
        %v995 = vrot.slane %v986, 4
        %v996 = vsel %vm887, 0.0, %v995
        %v997 = vrot.slane %v990, 4
        %v998 = vsel %vm887, 0.0, %v997
        %v999 = vsel %vm887, %v937, %v918
        %v1001 = vunpack.c.l.s4 1983009808
        %v1002 = vunpack.c.0.s8 %v1001
        %v1003 = vperm.slane %v999, %v1002
        %v1004 = vrot.slane %v938, 4
        %v1005 = vsel %vm887, %v1004, %v936
        %v1007 = vunpack.c.l.s4 1983009808
        %v1008 = vunpack.c.0.s8 %v1007
        %v1009 = vperm.slane %v1005, %v1008
        %v1010 = vsel %vm887, %v941, %v930
        %v1012 = vunpack.c.l.s4 1983009808
        %v1013 = vunpack.c.0.s8 %v1012
        %v1014 = vperm.slane %v1010, %v1013
        %v1015 = vrot.slane %v942, 4
        %v1016 = vsel %vm887, %v1015, %v940
        %v1018 = vunpack.c.l.s4 1983009808
        %v1019 = vunpack.c.0.s8 %v1018
        %v1020 = vperm.slane %v1016, %v1019
        %v1021 = vrot.slane %v1009, 4
        %v1022 = vsel %vm887, %v1021, %v1003
        %v1023 = vrot.slane %v1003, 4
        %v1024 = vsel %vm887, %v1009, %v1023
        %v1026 = vunpack.c.l.s4 1934713408
        %v1027 = vunpack.c.0.s8 %v1026
        %v1028 = vperm.slane %v1022, %v1027
        %v1030 = vunpack.c.l.s4 1934713408
        %v1031 = vunpack.c.0.s8 %v1030
        %v1032 = vperm.slane %v1024, %v1031
        %v1033 = vrot.slane %v1020, 4
        %v1034 = vsel %vm887, %v1033, %v1014
        %v1035 = vrot.slane %v1014, 4
        %v1036 = vsel %vm887, %v1020, %v1035
        %v1038 = vunpack.c.l.s4 1934713408
        %v1039 = vunpack.c.0.s8 %v1038
        %v1040 = vperm.slane %v1034, %v1039
        %v1042 = vunpack.c.l.s4 1934713408
        %v1043 = vunpack.c.0.s8 %v1042
        %v1044 = vperm.slane %v1036, %v1043
        %v1045 = vrot.slane %v1040, 4
        %v1046 = vsel %vm887, %v1045, %v1028
        %v1047 = vrot.slane %v1028, 4
        %v1048 = vsel %vm887, %v1040, %v1047
        %v1049 = vrot.slane %v1044, 4
        %v1050 = vsel %vm887, %v1049, %v1032
        %v1051 = vrot.slane %v1032, 4
        %v1052 = vsel %vm887, %v1044, %v1051
        %v1053 = vsel %vm887, %v993, %v974
        %v1055 = vunpack.c.l.s4 1983009808
        %v1056 = vunpack.c.0.s8 %v1055
        %v1057 = vperm.slane %v1053, %v1056
        %v1058 = vrot.slane %v994, 4
        %v1059 = vsel %vm887, %v1058, %v992
        %v1061 = vunpack.c.l.s4 1983009808
        %v1062 = vunpack.c.0.s8 %v1061
        %v1063 = vperm.slane %v1059, %v1062
        %v1064 = vsel %vm887, %v997, %v986
        %v1066 = vunpack.c.l.s4 1983009808
        %v1067 = vunpack.c.0.s8 %v1066
        %v1068 = vperm.slane %v1064, %v1067
        %v1069 = vrot.slane %v998, 4
        %v1070 = vsel %vm887, %v1069, %v996
        %v1072 = vunpack.c.l.s4 1983009808
        %v1073 = vunpack.c.0.s8 %v1072
        %v1074 = vperm.slane %v1070, %v1073
        %v1075 = vrot.slane %v1063, 4
        %v1076 = vsel %vm887, %v1075, %v1057
        %v1077 = vrot.slane %v1057, 4
        %v1078 = vsel %vm887, %v1063, %v1077
        %v1080 = vunpack.c.l.s4 1934713408
        %v1081 = vunpack.c.0.s8 %v1080
        %v1082 = vperm.slane %v1076, %v1081
        %v1084 = vunpack.c.l.s4 1934713408
        %v1085 = vunpack.c.0.s8 %v1084
        %v1086 = vperm.slane %v1078, %v1085
        %v1087 = vrot.slane %v1074, 4
        %v1088 = vsel %vm887, %v1087, %v1068
        %v1089 = vrot.slane %v1068, 4
        %v1090 = vsel %vm887, %v1074, %v1089
        %v1092 = vunpack.c.l.s4 1934713408
        %v1093 = vunpack.c.0.s8 %v1092
        %v1094 = vperm.slane %v1088, %v1093
        %v1096 = vunpack.c.l.s4 1934713408
        %v1097 = vunpack.c.0.s8 %v1096
        %v1098 = vperm.slane %v1090, %v1097
        %v1099 = vrot.slane %v1094, 4
        %v1100 = vsel %vm887, %v1099, %v1082
        %v1101 = vrot.slane %v1082, 4
        %v1102 = vsel %vm887, %v1094, %v1101
        %v1103 = vrot.slane %v1098, 4
        %v1104 = vsel %vm887, %v1103, %v1086
        %v1105 = vrot.slane %v1086, 4
        %v1106 = vsel %vm887, %v1098, %v1105
        %1107 = vrot.lane.b32.xlu0 %v862, 96
        %v1108 = vpop.permute.xlu0 %1107
        %1109 = vrot.lane.b32.xlu0 %v864, 96
        %v1110 = vpop.permute.xlu0 %1109
        %1111 = vrot.lane.b32.xlu0 %v869, 96
        %v1112 = vpop.permute.xlu0 %1111
        %1113 = vrot.lane.b32.xlu0 %v871, 96
        %v1114 = vpop.permute.xlu0 %1113
        %1115 = vrot.lane.b32.xlu0 %v875, 96
        %v1116 = vpop.permute.xlu0 %1115
        %1117 = vrot.lane.b32.xlu0 %v877, 96
        %v1118 = vpop.permute.xlu0 %1117
        %1119 = vrot.lane.b32.xlu0 %v881, 96
        %v1120 = vpop.permute.xlu0 %1119
        %1121 = vrot.lane.b32.xlu0 %v883, 96
        %v1122 = vpop.permute.xlu0 %1121
        %v1131 = vrot.slane %v1116, 4
        %v1132 = vsel %vm887, %v1131, %v1108
        %v1133 = vrot.slane %v1108, 4
        %v1134 = vsel %vm887, %v1116, %v1133
        %v1136 = vunpack.c.l.s4 1983009808
        %v1137 = vunpack.c.0.s8 %v1136
        %v1138 = vperm.slane %v1132, %v1137
        %v1140 = vunpack.c.l.s4 1983009808
        %v1141 = vunpack.c.0.s8 %v1140
        %v1142 = vperm.slane %v1134, %v1141
        %v1143 = vrot.slane %v1120, 4
        %v1144 = vsel %vm887, %v1143, %v1112
        %v1145 = vrot.slane %v1112, 4
        %v1146 = vsel %vm887, %v1120, %v1145
        %v1148 = vunpack.c.l.s4 1983009808
        %v1149 = vunpack.c.0.s8 %v1148
        %v1150 = vperm.slane %v1144, %v1149
        %v1152 = vunpack.c.l.s4 1983009808
        %v1153 = vunpack.c.0.s8 %v1152
        %v1154 = vperm.slane %v1146, %v1153
        %v1155 = vrot.slane %v1150, 4
        %v1156 = vsel %vm887, %v1155, %v1138
        %v1157 = vrot.slane %v1138, 4
        %v1158 = vsel %vm887, %v1150, %v1157
        %v1160 = vunpack.c.l.s4 1934713408
        %v1161 = vunpack.c.0.s8 %v1160
        %v1162 = vperm.slane %v1156, %v1161
        %v1164 = vunpack.c.l.s4 1934713408
        %v1165 = vunpack.c.0.s8 %v1164
        %v1166 = vperm.slane %v1158, %v1165
        %v1167 = vrot.slane %v1154, 4
        %v1168 = vsel %vm887, %v1167, %v1142
        %v1169 = vrot.slane %v1142, 4
        %v1170 = vsel %vm887, %v1154, %v1169
        %v1172 = vunpack.c.l.s4 1934713408
        %v1173 = vunpack.c.0.s8 %v1172
        %v1174 = vperm.slane %v1168, %v1173
        %v1176 = vunpack.c.l.s4 1934713408
        %v1177 = vunpack.c.0.s8 %v1176
        %v1178 = vperm.slane %v1170, %v1177
        %v1179 = vrot.slane %v1162, 4
        %v1180 = vsel %vm887, 0.0, %v1179
        %v1181 = vrot.slane %v1166, 4
        %v1182 = vsel %vm887, 0.0, %v1181
        %v1183 = vrot.slane %v1174, 4
        %v1184 = vsel %vm887, 0.0, %v1183
        %v1185 = vrot.slane %v1178, 4
        %v1186 = vsel %vm887, 0.0, %v1185
        %v1187 = vrot.slane %v1118, 4
        %v1188 = vsel %vm887, %v1187, %v1110
        %v1189 = vrot.slane %v1110, 4
        %v1190 = vsel %vm887, %v1118, %v1189
        %v1192 = vunpack.c.l.s4 1983009808
        %v1193 = vunpack.c.0.s8 %v1192
        %v1194 = vperm.slane %v1188, %v1193
        %v1196 = vunpack.c.l.s4 1983009808
        %v1197 = vunpack.c.0.s8 %v1196
        %v1198 = vperm.slane %v1190, %v1197
        %v1199 = vrot.slane %v1122, 4
        %v1200 = vsel %vm887, %v1199, %v1114
        %v1201 = vrot.slane %v1114, 4
        %v1202 = vsel %vm887, %v1122, %v1201
        %v1204 = vunpack.c.l.s4 1983009808
        %v1205 = vunpack.c.0.s8 %v1204
        %v1206 = vperm.slane %v1200, %v1205
        %v1208 = vunpack.c.l.s4 1983009808
        %v1209 = vunpack.c.0.s8 %v1208
        %v1210 = vperm.slane %v1202, %v1209
        %v1211 = vrot.slane %v1206, 4
        %v1212 = vsel %vm887, %v1211, %v1194
        %v1213 = vrot.slane %v1194, 4
        %v1214 = vsel %vm887, %v1206, %v1213
        %v1216 = vunpack.c.l.s4 1934713408
        %v1217 = vunpack.c.0.s8 %v1216
        %v1218 = vperm.slane %v1212, %v1217
        %v1220 = vunpack.c.l.s4 1934713408
        %v1221 = vunpack.c.0.s8 %v1220
        %v1222 = vperm.slane %v1214, %v1221
        %v1223 = vrot.slane %v1210, 4
        %v1224 = vsel %vm887, %v1223, %v1198
        %v1225 = vrot.slane %v1198, 4
        %v1226 = vsel %vm887, %v1210, %v1225
        %v1228 = vunpack.c.l.s4 1934713408
        %v1229 = vunpack.c.0.s8 %v1228
        %v1230 = vperm.slane %v1224, %v1229
        %v1232 = vunpack.c.l.s4 1934713408
        %v1233 = vunpack.c.0.s8 %v1232
        %v1234 = vperm.slane %v1226, %v1233
        %v1235 = vrot.slane %v1218, 4
        %v1236 = vsel %vm887, 0.0, %v1235
        %v1237 = vrot.slane %v1222, 4
        %v1238 = vsel %vm887, 0.0, %v1237
        %v1239 = vrot.slane %v1230, 4
        %v1240 = vsel %vm887, 0.0, %v1239
        %v1241 = vrot.slane %v1234, 4
        %v1242 = vsel %vm887, 0.0, %v1241
        %v1243 = vsel %vm887, %v1181, %v1162
        %v1245 = vunpack.c.l.s4 1983009808
        %v1246 = vunpack.c.0.s8 %v1245
        %v1247 = vperm.slane %v1243, %v1246
        %v1248 = vrot.slane %v1182, 4
        %v1249 = vsel %vm887, %v1248, %v1180
        %v1251 = vunpack.c.l.s4 1983009808
        %v1252 = vunpack.c.0.s8 %v1251
        %v1253 = vperm.slane %v1249, %v1252
        %v1254 = vsel %vm887, %v1185, %v1174
        %v1256 = vunpack.c.l.s4 1983009808
        %v1257 = vunpack.c.0.s8 %v1256
        %v1258 = vperm.slane %v1254, %v1257
        %v1259 = vrot.slane %v1186, 4
        %v1260 = vsel %vm887, %v1259, %v1184
        %v1262 = vunpack.c.l.s4 1983009808
        %v1263 = vunpack.c.0.s8 %v1262
        %v1264 = vperm.slane %v1260, %v1263
        %v1265 = vrot.slane %v1253, 4
        %v1266 = vsel %vm887, %v1265, %v1247
        %v1267 = vrot.slane %v1247, 4
        %v1268 = vsel %vm887, %v1253, %v1267
        %v1270 = vunpack.c.l.s4 1934713408
        %v1271 = vunpack.c.0.s8 %v1270
        %v1272 = vperm.slane %v1266, %v1271
        %v1274 = vunpack.c.l.s4 1934713408
        %v1275 = vunpack.c.0.s8 %v1274
        %v1276 = vperm.slane %v1268, %v1275
        %v1277 = vrot.slane %v1264, 4
        %v1278 = vsel %vm887, %v1277, %v1258
        %v1279 = vrot.slane %v1258, 4
        %v1280 = vsel %vm887, %v1264, %v1279
        %v1282 = vunpack.c.l.s4 1934713408
        %v1283 = vunpack.c.0.s8 %v1282
        %v1284 = vperm.slane %v1278, %v1283
        %v1286 = vunpack.c.l.s4 1934713408
        %v1287 = vunpack.c.0.s8 %v1286
        %v1288 = vperm.slane %v1280, %v1287
        %v1289 = vrot.slane %v1284, 4
        %v1290 = vsel %vm887, %v1289, %v1272
        %v1291 = vrot.slane %v1272, 4
        %v1292 = vsel %vm887, %v1284, %v1291
        %v1293 = vrot.slane %v1288, 4
        %v1294 = vsel %vm887, %v1293, %v1276
        %v1295 = vrot.slane %v1276, 4
        %v1296 = vsel %vm887, %v1288, %v1295
        %v1297 = vsel %vm887, %v1237, %v1218
        %v1299 = vunpack.c.l.s4 1983009808
        %v1300 = vunpack.c.0.s8 %v1299
        %v1301 = vperm.slane %v1297, %v1300
        %v1302 = vrot.slane %v1238, 4
        %v1303 = vsel %vm887, %v1302, %v1236
        %v1305 = vunpack.c.l.s4 1983009808
        %v1306 = vunpack.c.0.s8 %v1305
        %v1307 = vperm.slane %v1303, %v1306
        %v1308 = vsel %vm887, %v1241, %v1230
        %v1310 = vunpack.c.l.s4 1983009808
        %v1311 = vunpack.c.0.s8 %v1310
        %v1312 = vperm.slane %v1308, %v1311
        %v1313 = vrot.slane %v1242, 4
        %v1314 = vsel %vm887, %v1313, %v1240
        %v1316 = vunpack.c.l.s4 1983009808
        %v1317 = vunpack.c.0.s8 %v1316
        %v1318 = vperm.slane %v1314, %v1317
        %v1319 = vrot.slane %v1307, 4
        %v1320 = vsel %vm887, %v1319, %v1301
        %v1321 = vrot.slane %v1301, 4
        %v1322 = vsel %vm887, %v1307, %v1321
        %v1324 = vunpack.c.l.s4 1934713408
        %v1325 = vunpack.c.0.s8 %v1324
        %v1326 = vperm.slane %v1320, %v1325
        %v1328 = vunpack.c.l.s4 1934713408
        %v1329 = vunpack.c.0.s8 %v1328
        %v1330 = vperm.slane %v1322, %v1329
        %v1331 = vrot.slane %v1318, 4
        %v1332 = vsel %vm887, %v1331, %v1312
        %v1333 = vrot.slane %v1312, 4
        %v1334 = vsel %vm887, %v1318, %v1333
        %v1336 = vunpack.c.l.s4 1934713408
        %v1337 = vunpack.c.0.s8 %v1336
        %v1338 = vperm.slane %v1332, %v1337
        %v1340 = vunpack.c.l.s4 1934713408
        %v1341 = vunpack.c.0.s8 %v1340
        %v1342 = vperm.slane %v1334, %v1341
        %v1343 = vrot.slane %v1338, 4
        %v1344 = vsel %vm887, %v1343, %v1326
        %v1345 = vrot.slane %v1326, 4
        %v1346 = vsel %vm887, %v1338, %v1345
        %v1347 = vrot.slane %v1342, 4
        %v1348 = vsel %vm887, %v1347, %v1330
        %v1349 = vrot.slane %v1330, 4
        %v1350 = vsel %vm887, %v1342, %v1349
        %1351 = vrot.lane.b32.xlu0 %v862, 64
        %v1352 = vpop.permute.xlu0 %1351
        %1353 = vrot.lane.b32.xlu0 %v864, 64
        %v1354 = vpop.permute.xlu0 %1353
        %1355 = vrot.lane.b32.xlu0 %v869, 64
        %v1356 = vpop.permute.xlu0 %1355
        %1357 = vrot.lane.b32.xlu0 %v871, 64
        %v1358 = vpop.permute.xlu0 %1357
        %1359 = vrot.lane.b32.xlu0 %v875, 64
        %v1360 = vpop.permute.xlu0 %1359
        %1361 = vrot.lane.b32.xlu0 %v877, 64
        %v1362 = vpop.permute.xlu0 %1361
        %1363 = vrot.lane.b32.xlu0 %v881, 64
        %v1364 = vpop.permute.xlu0 %1363
        %1365 = vrot.lane.b32.xlu0 %v883, 64
        %v1366 = vpop.permute.xlu0 %1365
        %v1375 = vrot.slane %v1360, 4
        %v1376 = vsel %vm887, %v1375, %v1352
        %v1377 = vrot.slane %v1352, 4
        %v1378 = vsel %vm887, %v1360, %v1377
        %v1380 = vunpack.c.l.s4 1983009808
        %v1381 = vunpack.c.0.s8 %v1380
        %v1382 = vperm.slane %v1376, %v1381
        %v1384 = vunpack.c.l.s4 1983009808
        %v1385 = vunpack.c.0.s8 %v1384
        %v1386 = vperm.slane %v1378, %v1385
        %v1387 = vrot.slane %v1364, 4
        %v1388 = vsel %vm887, %v1387, %v1356
        %v1389 = vrot.slane %v1356, 4
        %v1390 = vsel %vm887, %v1364, %v1389
        %v1392 = vunpack.c.l.s4 1983009808
        %v1393 = vunpack.c.0.s8 %v1392
        %v1394 = vperm.slane %v1388, %v1393
        %v1396 = vunpack.c.l.s4 1983009808
        %v1397 = vunpack.c.0.s8 %v1396
        %v1398 = vperm.slane %v1390, %v1397
        %v1399 = vrot.slane %v1394, 4
        %v1400 = vsel %vm887, %v1399, %v1382
        %v1401 = vrot.slane %v1382, 4
        %v1402 = vsel %vm887, %v1394, %v1401
        %v1404 = vunpack.c.l.s4 1934713408
        %v1405 = vunpack.c.0.s8 %v1404
        %v1406 = vperm.slane %v1400, %v1405
        %v1408 = vunpack.c.l.s4 1934713408
        %v1409 = vunpack.c.0.s8 %v1408
        %v1410 = vperm.slane %v1402, %v1409
        %v1411 = vrot.slane %v1398, 4
        %v1412 = vsel %vm887, %v1411, %v1386
        %v1413 = vrot.slane %v1386, 4
        %v1414 = vsel %vm887, %v1398, %v1413
        %v1416 = vunpack.c.l.s4 1934713408
        %v1417 = vunpack.c.0.s8 %v1416
        %v1418 = vperm.slane %v1412, %v1417
        %v1420 = vunpack.c.l.s4 1934713408
        %v1421 = vunpack.c.0.s8 %v1420
        %v1422 = vperm.slane %v1414, %v1421
        %v1423 = vrot.slane %v1406, 4
        %v1424 = vsel %vm887, 0.0, %v1423
        %v1425 = vrot.slane %v1410, 4
        %v1426 = vsel %vm887, 0.0, %v1425
        %v1427 = vrot.slane %v1418, 4
        %v1428 = vsel %vm887, 0.0, %v1427
        %v1429 = vrot.slane %v1422, 4
        %v1430 = vsel %vm887, 0.0, %v1429
        %v1431 = vrot.slane %v1362, 4
        %v1432 = vsel %vm887, %v1431, %v1354
        %v1433 = vrot.slane %v1354, 4
        %v1434 = vsel %vm887, %v1362, %v1433
        %v1436 = vunpack.c.l.s4 1983009808
        %v1437 = vunpack.c.0.s8 %v1436
        %v1438 = vperm.slane %v1432, %v1437
        %v1440 = vunpack.c.l.s4 1983009808
        %v1441 = vunpack.c.0.s8 %v1440
        %v1442 = vperm.slane %v1434, %v1441
        %v1443 = vrot.slane %v1366, 4
        %v1444 = vsel %vm887, %v1443, %v1358
        %v1445 = vrot.slane %v1358, 4
        %v1446 = vsel %vm887, %v1366, %v1445
        %v1448 = vunpack.c.l.s4 1983009808
        %v1449 = vunpack.c.0.s8 %v1448
        %v1450 = vperm.slane %v1444, %v1449
        %v1452 = vunpack.c.l.s4 1983009808
        %v1453 = vunpack.c.0.s8 %v1452
        %v1454 = vperm.slane %v1446, %v1453
        %v1455 = vrot.slane %v1450, 4
        %v1456 = vsel %vm887, %v1455, %v1438
        %v1457 = vrot.slane %v1438, 4
        %v1458 = vsel %vm887, %v1450, %v1457
        %v1460 = vunpack.c.l.s4 1934713408
        %v1461 = vunpack.c.0.s8 %v1460
        %v1462 = vperm.slane %v1456, %v1461
        %v1464 = vunpack.c.l.s4 1934713408
        %v1465 = vunpack.c.0.s8 %v1464
        %v1466 = vperm.slane %v1458, %v1465
        %v1467 = vrot.slane %v1454, 4
        %v1468 = vsel %vm887, %v1467, %v1442
        %v1469 = vrot.slane %v1442, 4
        %v1470 = vsel %vm887, %v1454, %v1469
        %v1472 = vunpack.c.l.s4 1934713408
        %v1473 = vunpack.c.0.s8 %v1472
        %v1474 = vperm.slane %v1468, %v1473
        %v1476 = vunpack.c.l.s4 1934713408
        %v1477 = vunpack.c.0.s8 %v1476
        %v1478 = vperm.slane %v1470, %v1477
        %v1479 = vrot.slane %v1462, 4
        %v1480 = vsel %vm887, 0.0, %v1479
        %v1481 = vrot.slane %v1466, 4
        %v1482 = vsel %vm887, 0.0, %v1481
        %v1483 = vrot.slane %v1474, 4
        %v1484 = vsel %vm887, 0.0, %v1483
        %v1485 = vrot.slane %v1478, 4
        %v1486 = vsel %vm887, 0.0, %v1485
        %v1487 = vsel %vm887, %v1425, %v1406
        %v1489 = vunpack.c.l.s4 1983009808
        %v1490 = vunpack.c.0.s8 %v1489
        %v1491 = vperm.slane %v1487, %v1490
        %v1492 = vrot.slane %v1426, 4
        %v1493 = vsel %vm887, %v1492, %v1424
        %v1495 = vunpack.c.l.s4 1983009808
        %v1496 = vunpack.c.0.s8 %v1495
        %v1497 = vperm.slane %v1493, %v1496
        %v1498 = vsel %vm887, %v1429, %v1418
        %v1500 = vunpack.c.l.s4 1983009808
        %v1501 = vunpack.c.0.s8 %v1500
        %v1502 = vperm.slane %v1498, %v1501
        %v1503 = vrot.slane %v1430, 4
        %v1504 = vsel %vm887, %v1503, %v1428
        %v1506 = vunpack.c.l.s4 1983009808
        %v1507 = vunpack.c.0.s8 %v1506
        %v1508 = vperm.slane %v1504, %v1507
        %v1509 = vrot.slane %v1497, 4
        %v1510 = vsel %vm887, %v1509, %v1491
        %v1511 = vrot.slane %v1491, 4
        %v1512 = vsel %vm887, %v1497, %v1511
        %v1514 = vunpack.c.l.s4 1934713408
        %v1515 = vunpack.c.0.s8 %v1514
        %v1516 = vperm.slane %v1510, %v1515
        %v1518 = vunpack.c.l.s4 1934713408
        %v1519 = vunpack.c.0.s8 %v1518
        %v1520 = vperm.slane %v1512, %v1519
        %v1521 = vrot.slane %v1508, 4
        %v1522 = vsel %vm887, %v1521, %v1502
        %v1523 = vrot.slane %v1502, 4
        %v1524 = vsel %vm887, %v1508, %v1523
        %v1526 = vunpack.c.l.s4 1934713408
        %v1527 = vunpack.c.0.s8 %v1526
        %v1528 = vperm.slane %v1522, %v1527
        %v1530 = vunpack.c.l.s4 1934713408
        %v1531 = vunpack.c.0.s8 %v1530
        %v1532 = vperm.slane %v1524, %v1531
        %v1533 = vrot.slane %v1528, 4
        %v1534 = vsel %vm887, %v1533, %v1516
        %v1535 = vrot.slane %v1516, 4
        %v1536 = vsel %vm887, %v1528, %v1535
        %v1537 = vrot.slane %v1532, 4
        %v1538 = vsel %vm887, %v1537, %v1520
        %v1539 = vrot.slane %v1520, 4
        %v1540 = vsel %vm887, %v1532, %v1539
        %v1541 = vsel %vm887, %v1481, %v1462
        %v1543 = vunpack.c.l.s4 1983009808
        %v1544 = vunpack.c.0.s8 %v1543
        %v1545 = vperm.slane %v1541, %v1544
        %v1546 = vrot.slane %v1482, 4
        %v1547 = vsel %vm887, %v1546, %v1480
        %v1549 = vunpack.c.l.s4 1983009808
        %v1550 = vunpack.c.0.s8 %v1549
        %v1551 = vperm.slane %v1547, %v1550
        %v1552 = vsel %vm887, %v1485, %v1474
        %v1554 = vunpack.c.l.s4 1983009808
        %v1555 = vunpack.c.0.s8 %v1554
        %v1556 = vperm.slane %v1552, %v1555
        %v1557 = vrot.slane %v1486, 4
        %v1558 = vsel %vm887, %v1557, %v1484
        %v1560 = vunpack.c.l.s4 1983009808
        %v1561 = vunpack.c.0.s8 %v1560
        %v1562 = vperm.slane %v1558, %v1561
        %v1563 = vrot.slane %v1551, 4
        %v1564 = vsel %vm887, %v1563, %v1545
        %v1565 = vrot.slane %v1545, 4
        %v1566 = vsel %vm887, %v1551, %v1565
        %v1568 = vunpack.c.l.s4 1934713408
        %v1569 = vunpack.c.0.s8 %v1568
        %v1570 = vperm.slane %v1564, %v1569
        %v1572 = vunpack.c.l.s4 1934713408
        %v1573 = vunpack.c.0.s8 %v1572
        %v1574 = vperm.slane %v1566, %v1573
        %v1575 = vrot.slane %v1562, 4
        %v1576 = vsel %vm887, %v1575, %v1556
        %v1577 = vrot.slane %v1556, 4
        %v1578 = vsel %vm887, %v1562, %v1577
        %v1580 = vunpack.c.l.s4 1934713408
        %v1581 = vunpack.c.0.s8 %v1580
        %v1582 = vperm.slane %v1576, %v1581
        %v1584 = vunpack.c.l.s4 1934713408
        %v1585 = vunpack.c.0.s8 %v1584
        %v1586 = vperm.slane %v1578, %v1585
        %v1587 = vrot.slane %v1582, 4
        %v1588 = vsel %vm887, %v1587, %v1570
        %v1589 = vrot.slane %v1570, 4
        %v1590 = vsel %vm887, %v1582, %v1589
        %v1591 = vrot.slane %v1586, 4
        %v1592 = vsel %vm887, %v1591, %v1574
        %v1593 = vrot.slane %v1574, 4
        %v1594 = vsel %vm887, %v1586, %v1593
        %v1595 = vpack.c.bf16 %v1046, %v1046
        %v1596 = vpack.c.bf16 %v1100, %v1100
        %v1597 = vpack.c.bf16 %v1048, %v1048
        %v1598 = vpack.c.bf16 %v1102, %v1102
        %v1599 = vpack.c.bf16 %v1050, %v1050
        %v1600 = vpack.c.bf16 %v1104, %v1104
        %v1601 = vpack.c.bf16 %v1052, %v1052
        %v1602 = vpack.c.bf16 %v1106, %v1106
        %v1603 = vpack.c.bf16 %v1290, %v1290
        %v1604 = vpack.c.bf16 %v1344, %v1344
        %v1605 = vpack.c.bf16 %v1292, %v1292
        %v1606 = vpack.c.bf16 %v1346, %v1346
        %v1607 = vpack.c.bf16 %v1294, %v1294
        %v1608 = vpack.c.bf16 %v1348, %v1348
        %v1609 = vpack.c.bf16 %v1296, %v1296
        %v1610 = vpack.c.bf16 %v1350, %v1350
        %v1613 = vunpack.c.l.b16 %v1595
        %v1614 = vunpack.c.l.b16 %v1596
        %v1615 = vpack.c.b16 %v1614, %v1613
        %v1618 = vunpack.c.l.b16 %v1603
        %v1619 = vunpack.c.l.b16 %v1604
        %v1620 = vpack.c.b16 %v1619, %v1618
        %vm1621 = vcmask 64512
        %v1623 = vsel %vm1621, %v1615, 0
        %v1626 = vsel %vm1621, %v1620, 0
        %1628 = vmatpush.bf16.xpose.msra.mxu0 0
        %1629 = vmatpush.bf16.xpose.msra.mxu0 0
        %1630 = vmatpush.bf16.xpose.msra.mxu0 0
        %1631 = vmatpush.bf16.xpose.msra.mxu0 0
        %1632 = vmatpush.bf16.xpose.msra.mxu0 0
        %1633 = vmatpush.bf16.xpose.msra.mxu0 0
        %1634 = vmatpush.bf16.xpose.msra.mxu0 0
        %1635 = vmatpush.bf16.xpose.msra.mxu0 %v1626
        %1636 = vmatmul.bf16.gmra.mxu0 %v1623
        %v1637 = vpop.f32.mrf.mxu0
        %v1638 = vadd.f32 0.0, %v1637
        %v1639 = vpop.f32.mrf.mxu0
        %v1640 = vadd.f32 0.0, %v1639
        %1641 = vdwg.mxu0
        %v1644 = vunpack.c.l.b16 %v1597
        %v1645 = vunpack.c.l.b16 %v1598
        %v1646 = vpack.c.b16 %v1645, %v1644
        %v1649 = vunpack.c.l.b16 %v1605
        %v1650 = vunpack.c.l.b16 %v1606
        %v1651 = vpack.c.b16 %v1650, %v1649
        %v1653 = vsel %vm1621, %v1646, 0
        %v1656 = vsel %vm1621, %v1651, 0
        %1658 = vmatpush.bf16.xpose.msra.mxu0 0
        %1659 = vmatpush.bf16.xpose.msra.mxu0 0
        %1660 = vmatpush.bf16.xpose.msra.mxu0 0
        %1661 = vmatpush.bf16.xpose.msra.mxu0 0
        %1662 = vmatpush.bf16.xpose.msra.mxu0 0
        %1663 = vmatpush.bf16.xpose.msra.mxu0 0
        %1664 = vmatpush.bf16.xpose.msra.mxu0 0
        %1665 = vmatpush.bf16.xpose.msra.mxu0 %v1656
        %1666 = vmatmul.bf16.gmra.mxu0 %v1653
        %v1667 = vpop.f32.mrf.mxu0
        %v1668 = vadd.f32 0.0, %v1667
        %v1669 = vpop.f32.mrf.mxu0
        %v1670 = vadd.f32 0.0, %v1669
        %1671 = vdwg.mxu0
        %v1674 = vunpack.c.l.b16 %v1599
        %v1675 = vunpack.c.l.b16 %v1600
        %v1676 = vpack.c.b16 %v1675, %v1674
        %v1679 = vunpack.c.l.b16 %v1607
        %v1680 = vunpack.c.l.b16 %v1608
        %v1681 = vpack.c.b16 %v1680, %v1679
        %v1683 = vsel %vm1621, %v1676, 0
        %v1686 = vsel %vm1621, %v1681, 0
        %1688 = vmatpush.bf16.xpose.msra.mxu0 0
        %1689 = vmatpush.bf16.xpose.msra.mxu0 0
        %1690 = vmatpush.bf16.xpose.msra.mxu0 0
        %1691 = vmatpush.bf16.xpose.msra.mxu0 0
        %1692 = vmatpush.bf16.xpose.msra.mxu0 0
        %1693 = vmatpush.bf16.xpose.msra.mxu0 0
        %1694 = vmatpush.bf16.xpose.msra.mxu0 0
        %1695 = vmatpush.bf16.xpose.msra.mxu0 %v1686
        %1696 = vmatmul.bf16.gmra.mxu0 %v1683
        %v1697 = vpop.f32.mrf.mxu0
        %v1698 = vadd.f32 0.0, %v1697
        %v1699 = vpop.f32.mrf.mxu0
        %v1700 = vadd.f32 0.0, %v1699
        %1701 = vdwg.mxu0
        %v1704 = vunpack.c.l.b16 %v1601
        %v1705 = vunpack.c.l.b16 %v1602
        %v1706 = vpack.c.b16 %v1705, %v1704
        %v1709 = vunpack.c.l.b16 %v1609
        %v1710 = vunpack.c.l.b16 %v1610
        %v1711 = vpack.c.b16 %v1710, %v1709
        %v1713 = vsel %vm1621, %v1706, 0
        %v1716 = vsel %vm1621, %v1711, 0
        %1718 = vmatpush.bf16.xpose.msra.mxu0 0
        %1719 = vmatpush.bf16.xpose.msra.mxu0 0
        %1720 = vmatpush.bf16.xpose.msra.mxu0 0
        %1721 = vmatpush.bf16.xpose.msra.mxu0 0
        %1722 = vmatpush.bf16.xpose.msra.mxu0 0
        %1723 = vmatpush.bf16.xpose.msra.mxu0 0
        %1724 = vmatpush.bf16.xpose.msra.mxu0 0
        %1725 = vmatpush.bf16.xpose.msra.mxu0 %v1716
        %1726 = vmatmul.bf16.gmra.mxu0 %v1713
        %v1727 = vpop.f32.mrf.mxu0
        %v1728 = vadd.f32 0.0, %v1727
        %v1729 = vpop.f32.mrf.mxu0
        %v1730 = vadd.f32 0.0, %v1729
        %1731 = vdwg.mxu0
        %v1732 = vsel %vm762, 1, 0
        %v1733 = vsel %vm763, 1, 0
        %vm1734 = vcmp.eq.s32.totalorder %v1732, 1
        %vm1735 = vcmp.eq.s32.totalorder %v1733, 1
        %v1736 = vsel %vm1734, %v1638, -3.4028235e+38
        %v1737 = vsel %vm1735, %v1640, -3.4028235e+38
        %v1738 = vsel %vm1734, %v1668, -3.4028235e+38
        %v1739 = vsel %vm1735, %v1670, -3.4028235e+38
        %v1740 = vsel %vm1734, %v1698, -3.4028235e+38
        %v1741 = vsel %vm1735, %v1700, -3.4028235e+38
        %v1742 = vsel %vm1734, %v1728, -3.4028235e+38
        %v1743 = vsel %vm1735, %v1730, -3.4028235e+38
        %vm1744 = vcmask 130048
        %v1745 = vsel %vm1744, %v1736, -inf
        %1746 = vmax.xlane.f32.xlu0 %v1745
        %v1747 = vpop.xlane.xlu0 %1746
        %v1748 = vsel %vm1744, %v1737, -inf
        %1749 = vmax.xlane.f32.xlu0 %v1748
        %v1750 = vpop.xlane.xlu0 %1749
        %v1751 = vsel %vm1744, %v1738, -inf
        %1752 = vmax.xlane.f32.xlu0 %v1751
        %v1753 = vpop.xlane.xlu0 %1752
        %v1754 = vsel %vm1744, %v1739, -inf
        %1755 = vmax.xlane.f32.xlu0 %v1754
        %v1756 = vpop.xlane.xlu0 %1755
        %v1757 = vsel %vm1744, %v1740, -inf
        %1758 = vmax.xlane.f32.xlu0 %v1757
        %v1759 = vpop.xlane.xlu0 %1758
        %v1760 = vsel %vm1744, %v1741, -inf
        %1761 = vmax.xlane.f32.xlu0 %v1760
        %v1762 = vpop.xlane.xlu0 %1761
        %v1763 = vsel %vm1744, %v1742, -inf
        %1764 = vmax.xlane.f32.xlu0 %v1763
        %v1765 = vpop.xlane.xlu0 %1764
        %v1766 = vsel %vm1744, %v1743, -inf
        %1767 = vmax.xlane.f32.xlu0 %v1766
        %v1768 = vpop.xlane.xlu0 %1767
        %v1769 = vsub.f32 %v1736, %v1747
        %v1770 = vsub.f32 %v1737, %v1750
        %v1771 = vsub.f32 %v1738, %v1753
        %v1772 = vsub.f32 %v1739, %v1756
        %v1773 = vsub.f32 %v1740, %v1759
        %v1774 = vsub.f32 %v1741, %v1762
        %v1775 = vsub.f32 %v1742, %v1765
        %v1776 = vsub.f32 %v1743, %v1768
        %v1777 = vmul.f32 %v1769, 1.442695
        %v1778 = vpow.pop %v1777
        %v1779 = vmul.f32 %v1770, 1.442695
        %v1780 = vpow.pop %v1779
        %v1781 = vmul.f32 %v1771, 1.442695
        %v1782 = vpow.pop %v1781
        %v1783 = vmul.f32 %v1772, 1.442695
        %v1784 = vpow.pop %v1783
        %v1785 = vmul.f32 %v1773, 1.442695
        %v1786 = vpow.pop %v1785
        %v1787 = vmul.f32 %v1774, 1.442695
        %v1788 = vpow.pop %v1787
        %v1789 = vmul.f32 %v1775, 1.442695
        %v1790 = vpow.pop %v1789
        %v1791 = vmul.f32 %v1776, 1.442695
        %v1792 = vpow.pop %v1791
        %v1793 = vsel %vm1744, %v1778, 0.0
        %1794 = vadd.xlane.f32.xlu0 %v1793
        %v1795 = vpop.xlane.xlu0 %1794
        %v1796 = vsel %vm1744, %v1780, 0.0
        %1797 = vadd.xlane.f32.xlu0 %v1796
        %v1798 = vpop.xlane.xlu0 %1797
        %v1799 = vsel %vm1744, %v1782, 0.0
        %1800 = vadd.xlane.f32.xlu0 %v1799
        %v1801 = vpop.xlane.xlu0 %1800
        %v1802 = vsel %vm1744, %v1784, 0.0
        %1803 = vadd.xlane.f32.xlu0 %v1802
        %v1804 = vpop.xlane.xlu0 %1803
        %v1805 = vsel %vm1744, %v1786, 0.0
        %1806 = vadd.xlane.f32.xlu0 %v1805
        %v1807 = vpop.xlane.xlu0 %1806
        %v1808 = vsel %vm1744, %v1788, 0.0
        %1809 = vadd.xlane.f32.xlu0 %v1808
        %v1810 = vpop.xlane.xlu0 %1809
        %v1811 = vsel %vm1744, %v1790, 0.0
        %1812 = vadd.xlane.f32.xlu0 %v1811
        %v1813 = vpop.xlane.xlu0 %1812
        %v1814 = vsel %vm1744, %v1792, 0.0
        %1815 = vadd.xlane.f32.xlu0 %v1814
        %v1816 = vpop.xlane.xlu0 %1815
        %v1817 = vrcp.pop %v1795
        %v1818 = vrcp.pop %v1798
        %v1819 = vrcp.pop %v1801
        %v1820 = vrcp.pop %v1804
        %v1821 = vrcp.pop %v1807
        %v1822 = vrcp.pop %v1810
        %v1823 = vrcp.pop %v1813
        %v1824 = vrcp.pop %v1816
        %v1825 = vmul.f32 %v1778, %v1817
        %v1826 = vmul.f32 %v1780, %v1818
        %v1827 = vmul.f32 %v1782, %v1819
        %v1828 = vmul.f32 %v1784, %v1820
        %v1829 = vmul.f32 %v1786, %v1821
        %v1830 = vmul.f32 %v1788, %v1822
        %v1831 = vmul.f32 %v1790, %v1823
        %v1832 = vmul.f32 %v1792, %v1824
        %v1833 = vpack.c.bf16 %v1825, %v1825
        %v1834 = vpack.c.bf16 %v1826, %v1826
        %v1835 = vpack.c.bf16 %v1827, %v1827
        %v1836 = vpack.c.bf16 %v1828, %v1828
        %v1837 = vpack.c.bf16 %v1829, %v1829
        %v1838 = vpack.c.bf16 %v1830, %v1830
        %v1839 = vpack.c.bf16 %v1831, %v1831
        %v1840 = vpack.c.bf16 %v1832, %v1832
        %v1841 = vpack.c.bf16 %v1534, %v1534
        %v1842 = vpack.c.bf16 %v1588, %v1588
        %v1843 = vpack.c.bf16 %v1536, %v1536
        %v1844 = vpack.c.bf16 %v1590, %v1590
        %v1845 = vpack.c.bf16 %v1538, %v1538
        %v1846 = vpack.c.bf16 %v1592, %v1592
        %v1847 = vpack.c.bf16 %v1540, %v1540
        %v1848 = vpack.c.bf16 %v1594, %v1594
        %v1851 = vunpack.c.l.b16 %v1833
        %v1852 = vunpack.c.l.b16 %v1834
        %v1853 = vpack.c.b16 %v1852, %v1851
        %v1856 = vunpack.c.l.b16 %v1841
        %v1857 = vunpack.c.l.b16 %v1842
        %v1858 = vpack.c.b16 %v1857, %v1856
        %v1861 = vsel %vm1744, %v1853, 0
        %1863 = vmatpush.bf16.msra.mxu0 0
        %1864 = vmatpush.bf16.msra.mxu0 0
        %1865 = vmatpush.bf16.msra.mxu0 0
        %1866 = vmatpush.bf16.msra.mxu0 0
        %1867 = vmatpush.bf16.msra.mxu0 0
        %1868 = vmatpush.bf16.msra.mxu0 0
        %1869 = vmatpush.bf16.msra.mxu0 0
        %1870 = vmatpush.bf16.msra.mxu0 %v1858
        %1871 = vmatmul.bf16.gmra.mxu0 %v1861
        %v1872 = vpop.f32.mrf.mxu0
        %v1873 = vadd.f32 0.0, %v1872
        %v1874 = vpop.f32.mrf.mxu0
        %v1875 = vadd.f32 0.0, %v1874
        %1876 = vdwg.mxu0
        %v1879 = vunpack.c.l.b16 %v1835
        %v1880 = vunpack.c.l.b16 %v1836
        %v1881 = vpack.c.b16 %v1880, %v1879
        %v1884 = vunpack.c.l.b16 %v1843
        %v1885 = vunpack.c.l.b16 %v1844
        %v1886 = vpack.c.b16 %v1885, %v1884
        %v1889 = vsel %vm1744, %v1881, 0
        %1891 = vmatpush.bf16.msra.mxu0 0
        %1892 = vmatpush.bf16.msra.mxu0 0
        %1893 = vmatpush.bf16.msra.mxu0 0
        %1894 = vmatpush.bf16.msra.mxu0 0
        %1895 = vmatpush.bf16.msra.mxu0 0
        %1896 = vmatpush.bf16.msra.mxu0 0
        %1897 = vmatpush.bf16.msra.mxu0 0
        %1898 = vmatpush.bf16.msra.mxu0 %v1886
        %1899 = vmatmul.bf16.gmra.mxu0 %v1889
        %v1900 = vpop.f32.mrf.mxu0
        %v1901 = vadd.f32 0.0, %v1900
        %v1902 = vpop.f32.mrf.mxu0
        %v1903 = vadd.f32 0.0, %v1902
        %1904 = vdwg.mxu0
        %v1907 = vunpack.c.l.b16 %v1837
        %v1908 = vunpack.c.l.b16 %v1838
        %v1909 = vpack.c.b16 %v1908, %v1907
        %v1912 = vunpack.c.l.b16 %v1845
        %v1913 = vunpack.c.l.b16 %v1846
        %v1914 = vpack.c.b16 %v1913, %v1912
        %v1917 = vsel %vm1744, %v1909, 0
        %1919 = vmatpush.bf16.msra.mxu0 0
        %1920 = vmatpush.bf16.msra.mxu0 0
        %1921 = vmatpush.bf16.msra.mxu0 0
        %1922 = vmatpush.bf16.msra.mxu0 0
        %1923 = vmatpush.bf16.msra.mxu0 0
        %1924 = vmatpush.bf16.msra.mxu0 0
        %1925 = vmatpush.bf16.msra.mxu0 0
        %1926 = vmatpush.bf16.msra.mxu0 %v1914
        %1927 = vmatmul.bf16.gmra.mxu0 %v1917
        %v1928 = vpop.f32.mrf.mxu0
        %v1929 = vadd.f32 0.0, %v1928
        %v1930 = vpop.f32.mrf.mxu0
        %v1931 = vadd.f32 0.0, %v1930
        %1932 = vdwg.mxu0
        %v1935 = vunpack.c.l.b16 %v1839
        %v1936 = vunpack.c.l.b16 %v1840
        %v1937 = vpack.c.b16 %v1936, %v1935
        %v1940 = vunpack.c.l.b16 %v1847
        %v1941 = vunpack.c.l.b16 %v1848
        %v1942 = vpack.c.b16 %v1941, %v1940
        %v1945 = vsel %vm1744, %v1937, 0
        %1947 = vmatpush.bf16.msra.mxu0 0
        %1948 = vmatpush.bf16.msra.mxu0 0
        %1949 = vmatpush.bf16.msra.mxu0 0
        %1950 = vmatpush.bf16.msra.mxu0 0
        %1951 = vmatpush.bf16.msra.mxu0 0
        %1952 = vmatpush.bf16.msra.mxu0 0
        %1953 = vmatpush.bf16.msra.mxu0 0
        %1954 = vmatpush.bf16.msra.mxu0 %v1942
        %1955 = vmatmul.bf16.gmra.mxu0 %v1945
        %v1956 = vpop.f32.mrf.mxu0
        %v1957 = vadd.f32 0.0, %v1956
        %v1958 = vpop.f32.mrf.mxu0
        %v1959 = vadd.f32 0.0, %v1958
        %1960 = vdwg.mxu0
        %v1961 = vrot.slane %v1929, 4
        %v1962 = vsel %vm887, %v1961, %v1873
        %v1963 = vrot.slane %v1873, 4
        %v1964 = vsel %vm887, %v1929, %v1963
        %v1966 = vunpack.c.l.s4 1983009808
        %v1967 = vunpack.c.0.s8 %v1966
        %v1968 = vperm.slane %v1962, %v1967
        %v1970 = vunpack.c.l.s4 1983009808
        %v1971 = vunpack.c.0.s8 %v1970
        %v1972 = vperm.slane %v1964, %v1971
        %v1973 = vrot.slane %v1957, 4
        %v1974 = vsel %vm887, %v1973, %v1901
        %v1975 = vrot.slane %v1901, 4
        %v1976 = vsel %vm887, %v1957, %v1975
        %v1978 = vunpack.c.l.s4 1983009808
        %v1979 = vunpack.c.0.s8 %v1978
        %v1980 = vperm.slane %v1974, %v1979
        %v1982 = vunpack.c.l.s4 1983009808
        %v1983 = vunpack.c.0.s8 %v1982
        %v1984 = vperm.slane %v1976, %v1983
        %v1985 = vrot.slane %v1980, 4
        %v1986 = vsel %vm887, %v1985, %v1968
        %v1987 = vrot.slane %v1968, 4
        %v1988 = vsel %vm887, %v1980, %v1987
        %v1990 = vunpack.c.l.s4 1934713408
        %v1991 = vunpack.c.0.s8 %v1990
        %v1992 = vperm.slane %v1986, %v1991
        %v1994 = vunpack.c.l.s4 1934713408
        %v1995 = vunpack.c.0.s8 %v1994
        %v1996 = vperm.slane %v1988, %v1995
        %v1997 = vrot.slane %v1984, 4
        %v1998 = vsel %vm887, %v1997, %v1972
        %v1999 = vrot.slane %v1972, 4
        %v2000 = vsel %vm887, %v1984, %v1999
        %v2002 = vunpack.c.l.s4 1934713408
        %v2003 = vunpack.c.0.s8 %v2002
        %v2004 = vperm.slane %v1998, %v2003
        %v2006 = vunpack.c.l.s4 1934713408
        %v2007 = vunpack.c.0.s8 %v2006
        %v2008 = vperm.slane %v2000, %v2007
        %v2009 = vrot.slane %v1992, 4
        %v2010 = vsel %vm887, 0.0, %v2009
        %v2011 = vrot.slane %v1996, 4
        %v2012 = vsel %vm887, 0.0, %v2011
        %v2013 = vrot.slane %v2004, 4
        %v2014 = vsel %vm887, 0.0, %v2013
        %v2015 = vrot.slane %v2008, 4
        %v2016 = vsel %vm887, 0.0, %v2015
        %v2017 = vrot.slane %v1931, 4
        %v2018 = vsel %vm887, %v2017, %v1875
        %v2019 = vrot.slane %v1875, 4
        %v2020 = vsel %vm887, %v1931, %v2019
        %v2022 = vunpack.c.l.s4 1983009808
        %v2023 = vunpack.c.0.s8 %v2022
        %v2024 = vperm.slane %v2018, %v2023
        %v2026 = vunpack.c.l.s4 1983009808
        %v2027 = vunpack.c.0.s8 %v2026
        %v2028 = vperm.slane %v2020, %v2027
        %v2029 = vrot.slane %v1959, 4
        %v2030 = vsel %vm887, %v2029, %v1903
        %v2031 = vrot.slane %v1903, 4
        %v2032 = vsel %vm887, %v1959, %v2031
        %v2034 = vunpack.c.l.s4 1983009808
        %v2035 = vunpack.c.0.s8 %v2034
        %v2036 = vperm.slane %v2030, %v2035
        %v2038 = vunpack.c.l.s4 1983009808
        %v2039 = vunpack.c.0.s8 %v2038
        %v2040 = vperm.slane %v2032, %v2039
        %v2041 = vrot.slane %v2036, 4
        %v2042 = vsel %vm887, %v2041, %v2024
        %v2043 = vrot.slane %v2024, 4
        %v2044 = vsel %vm887, %v2036, %v2043
        %v2046 = vunpack.c.l.s4 1934713408
        %v2047 = vunpack.c.0.s8 %v2046
        %v2048 = vperm.slane %v2042, %v2047
        %v2050 = vunpack.c.l.s4 1934713408
        %v2051 = vunpack.c.0.s8 %v2050
        %v2052 = vperm.slane %v2044, %v2051
        %v2053 = vrot.slane %v2040, 4
        %v2054 = vsel %vm887, %v2053, %v2028
        %v2055 = vrot.slane %v2028, 4
        %v2056 = vsel %vm887, %v2040, %v2055
        %v2058 = vunpack.c.l.s4 1934713408
        %v2059 = vunpack.c.0.s8 %v2058
        %v2060 = vperm.slane %v2054, %v2059
        %v2062 = vunpack.c.l.s4 1934713408
        %v2063 = vunpack.c.0.s8 %v2062
        %v2064 = vperm.slane %v2056, %v2063
        %v2065 = vrot.slane %v2048, 4
        %v2066 = vsel %vm887, 0.0, %v2065
        %v2067 = vrot.slane %v2052, 4
        %v2068 = vsel %vm887, 0.0, %v2067
        %v2069 = vrot.slane %v2060, 4
        %v2070 = vsel %vm887, 0.0, %v2069
        %v2071 = vrot.slane %v2064, 4
        %v2072 = vsel %vm887, 0.0, %v2071
        %v2073 = vsel %vm887, %v2011, %v1992
        %v2075 = vunpack.c.l.s4 1983009808
        %v2076 = vunpack.c.0.s8 %v2075
        %v2077 = vperm.slane %v2073, %v2076
        %v2078 = vrot.slane %v2012, 4
        %v2079 = vsel %vm887, %v2078, %v2010
        %v2081 = vunpack.c.l.s4 1983009808
        %v2082 = vunpack.c.0.s8 %v2081
        %v2083 = vperm.slane %v2079, %v2082
        %v2084 = vsel %vm887, %v2015, %v2004
        %v2086 = vunpack.c.l.s4 1983009808
        %v2087 = vunpack.c.0.s8 %v2086
        %v2088 = vperm.slane %v2084, %v2087
        %v2089 = vrot.slane %v2016, 4
        %v2090 = vsel %vm887, %v2089, %v2014
        %v2092 = vunpack.c.l.s4 1983009808
        %v2093 = vunpack.c.0.s8 %v2092
        %v2094 = vperm.slane %v2090, %v2093
        %v2095 = vrot.slane %v2083, 4
        %v2096 = vsel %vm887, %v2095, %v2077
        %v2097 = vrot.slane %v2077, 4
        %v2098 = vsel %vm887, %v2083, %v2097
        %v2100 = vunpack.c.l.s4 1934713408
        %v2101 = vunpack.c.0.s8 %v2100
        %v2102 = vperm.slane %v2096, %v2101
        %v2104 = vunpack.c.l.s4 1934713408
        %v2105 = vunpack.c.0.s8 %v2104
        %v2106 = vperm.slane %v2098, %v2105
        %v2107 = vrot.slane %v2094, 4
        %v2108 = vsel %vm887, %v2107, %v2088
        %v2109 = vrot.slane %v2088, 4
        %v2110 = vsel %vm887, %v2094, %v2109
        %v2112 = vunpack.c.l.s4 1934713408
        %v2113 = vunpack.c.0.s8 %v2112
        %v2114 = vperm.slane %v2108, %v2113
        %v2116 = vunpack.c.l.s4 1934713408
        %v2117 = vunpack.c.0.s8 %v2116
        %v2118 = vperm.slane %v2110, %v2117
        %v2119 = vrot.slane %v2114, 4
        %v2120 = vsel %vm887, %v2119, %v2102
        %v2121 = vrot.slane %v2102, 4
        %v2122 = vsel %vm887, %v2114, %v2121
        %v2123 = vrot.slane %v2118, 4
        %v2124 = vsel %vm887, %v2123, %v2106
        %v2125 = vrot.slane %v2106, 4
        %v2126 = vsel %vm887, %v2118, %v2125
        %v2127 = vsel %vm887, %v2067, %v2048
        %v2129 = vunpack.c.l.s4 1983009808
        %v2130 = vunpack.c.0.s8 %v2129
        %v2131 = vperm.slane %v2127, %v2130
        %v2132 = vrot.slane %v2068, 4
        %v2133 = vsel %vm887, %v2132, %v2066
        %v2135 = vunpack.c.l.s4 1983009808
        %v2136 = vunpack.c.0.s8 %v2135
        %v2137 = vperm.slane %v2133, %v2136
        %v2138 = vsel %vm887, %v2071, %v2060
        %v2140 = vunpack.c.l.s4 1983009808
        %v2141 = vunpack.c.0.s8 %v2140
        %v2142 = vperm.slane %v2138, %v2141
        %v2143 = vrot.slane %v2072, 4
        %v2144 = vsel %vm887, %v2143, %v2070
        %v2146 = vunpack.c.l.s4 1983009808
        %v2147 = vunpack.c.0.s8 %v2146
        %v2148 = vperm.slane %v2144, %v2147
        %v2149 = vrot.slane %v2137, 4
        %v2150 = vsel %vm887, %v2149, %v2131
        %v2151 = vrot.slane %v2131, 4
        %v2152 = vsel %vm887, %v2137, %v2151
        %v2154 = vunpack.c.l.s4 1934713408
        %v2155 = vunpack.c.0.s8 %v2154
        %v2156 = vperm.slane %v2150, %v2155
        %v2158 = vunpack.c.l.s4 1934713408
        %v2159 = vunpack.c.0.s8 %v2158
        %v2160 = vperm.slane %v2152, %v2159
        %v2161 = vrot.slane %v2148, 4
        %v2162 = vsel %vm887, %v2161, %v2142
        %v2163 = vrot.slane %v2142, 4
        %v2164 = vsel %vm887, %v2148, %v2163
        %v2166 = vunpack.c.l.s4 1934713408
        %v2167 = vunpack.c.0.s8 %v2166
        %v2168 = vperm.slane %v2162, %v2167
        %v2170 = vunpack.c.l.s4 1934713408
        %v2171 = vunpack.c.0.s8 %v2170
        %v2172 = vperm.slane %v2164, %v2171
        %v2173 = vrot.slane %v2168, 4
        %v2174 = vsel %vm887, %v2173, %v2156
        %v2175 = vrot.slane %v2156, 4
        %v2176 = vsel %vm887, %v2168, %v2175
        %v2177 = vrot.slane %v2172, 4
        %v2178 = vsel %vm887, %v2177, %v2160
        %v2179 = vrot.slane %v2160, 4
        %v2180 = vsel %vm887, %v2172, %v2179
        %2183 = vrot.lane.b32.xlu0 %v2122, 8
        %v2184 = vpop.permute.xlu0 %2183
        %2185 = vrot.lane.b32.xlu0 %v2176, 8
        %v2186 = vpop.permute.xlu0 %2185
        %2191 = vrot.lane.b32.xlu0 %v2124, 16
        %v2192 = vpop.permute.xlu0 %2191
        %2193 = vrot.lane.b32.xlu0 %v2178, 16
        %v2194 = vpop.permute.xlu0 %2193
        %2199 = vrot.lane.b32.xlu0 %v2126, 24
        %v2200 = vpop.permute.xlu0 %2199
        %2201 = vrot.lane.b32.xlu0 %v2180, 24
        %v2202 = vpop.permute.xlu0 %2201
        %v2205 = vsel %vm1621, %v2120, %v2184
        %v2206 = vsel %vm1621, %v2174, %v2186
        %v2207 = vsel %vm1744, %v2205, %v2192
        %v2208 = vsel %vm1744, %v2206, %v2194
        %vm2209 = vcmask 195584
        %v2210 = vsel %vm2209, %v2207, %v2200
        %v2211 = vsel %vm2209, %v2208, %v2202
        %v2212 = vpack.c.bf16 %v2211, %v2210
        %v2213 = vld [vmem:[%s712] sm:$0xf]
        %v2214 = vld [vmem:[%s712 + $0x4] sm:$0xf]
        %v2215 = vld [vmem:[%s712 + $0x8] sm:$0xf]
        %v2216 = vld [vmem:[%s712 + $0xc] sm:$0xf]
        %v2217 = vld [vmem:[%s715] sm:$0x1]
        %v2219 = vperm.slane %v2217, 0
        %v2225 = vunpack.c.l.b16 %v2213
        %v2226 = vunpack.c.l.b16 %v2214
        %v2227 = vunpack.c.l.b16 %v2215
        %v2228 = vunpack.c.l.b16 %v2216
        %v2229 = vpack.c.b16 %v2226, %v2225
        %v2230 = vpack.c.b16 %v2228, %v2227
        %v2234 = vsel %vm766, %v2212, 0
        %2236 = vmatpush.bf16.msra.mxu0 0
        %2237 = vmatpush.bf16.msra.mxu0 0
        %2238 = vmatpush.bf16.msra.mxu0 0
        %2239 = vmatpush.bf16.msra.mxu0 0
        %2240 = vmatpush.bf16.msra.mxu0 0
        %2241 = vmatpush.bf16.msra.mxu0 0
        %2242 = vmatpush.bf16.msra.mxu0 %v2230
        %2243 = vmatpush.bf16.msra.mxu0 %v2229
        %2244 = vmatmul.bf16.gmra.mxu0 %v2234
        %v2245 = vpop.f32.mrf.mxu0
        %v2246 = vadd.f32 %v2219, %v2245
        %v2247 = vpop.f32.mrf.mxu0
        %v2248 = vadd.f32 %v2219, %v2247
        %2249 = vdwg.mxu0
        %v2250 = vadd.f32 %v748, %v2246
        %v2251 = vadd.f32 %v749, %v2248
        %v2252 = vld [vmem:[%s718] sm:$0x1]
        %v2253 = vld [vmem:[%s721] sm:$0x1]
        %v2254 = vsel %vm766, %v2250, 0.0
        %2255 = vadd.xlane.f32.xlu0 %v2254
        %v2256 = vpop.xlane.xlu0 %2255
        %v2257 = vsel %vm766, %v2251, 0.0
        %2258 = vadd.xlane.f32.xlu0 %v2257
        %v2259 = vpop.xlane.xlu0 %2258
        %v2260 = vmul.f32 %v2256, %v779
        %v2261 = vmul.f32 %v2259, %v779
        %v2262 = vsub.f32 %v2250, %v2260
        %v2263 = vsub.f32 %v2251, %v2261
        %v2264 = vmul.f32 %v2262, %v2262
        %v2265 = vmul.f32 %v2263, %v2263
        %v2266 = vsel %vm766, %v2264, 0.0
        %2267 = vadd.xlane.f32.xlu0 %v2266
        %v2268 = vpop.xlane.xlu0 %2267
        %v2269 = vsel %vm766, %v2265, 0.0
        %2270 = vadd.xlane.f32.xlu0 %v2269
        %v2271 = vpop.xlane.xlu0 %2270
        %v2272 = vmul.f32 %v2268, %v779
        %v2273 = vmul.f32 %v2271, %v779
        %v2274 = vadd.f32 %v2272, 1e-05
        %v2275 = vadd.f32 %v2273, 1e-05
        %v2276 = vrsqrt.pop %v2274
        %v2277 = vmul.f32 %v2276, %v2274
        %v2278 = vmul.f32 %v2277, %v2276
        %v2279 = vmul.f32 0.5, %v2278
        %v2280 = vsub.f32 1.5, %v2279
        %v2281 = vmul.f32 %v2276, %v2280
        %vm2282 = vweird.f32 %v2274
        %vm2283 = vweird.f32 %v2276
        %vm2284 = vmor %vm2282, %vm2283
        %v2285 = vsel %vm2284, %v2276, %v2281
        %v2286 = vrsqrt.pop %v2275
        %v2287 = vmul.f32 %v2286, %v2275
        %v2288 = vmul.f32 %v2287, %v2286
        %v2289 = vmul.f32 0.5, %v2288
        %v2290 = vsub.f32 1.5, %v2289
        %v2291 = vmul.f32 %v2286, %v2290
        %vm2292 = vweird.f32 %v2275
        %vm2293 = vweird.f32 %v2286
        %vm2294 = vmor %vm2292, %vm2293
        %v2295 = vsel %vm2294, %v2286, %v2291
        %v2296 = vmul.f32 %v2262, %v2285
        %v2297 = vmul.f32 %v2263, %v2295
        %v2299 = vperm.slane %v2252, 0
        %v2301 = vmul.f32 %v2296, %v2299
        %v2302 = vmul.f32 %v2297, %v2299
        %v2304 = vperm.slane %v2253, 0
        %v2306 = vadd.f32 %v2301, %v2304
        %v2307 = vadd.f32 %v2302, %v2304
        %v2308 = vpack.c.bf16 %v2307, %v2306
        %v2309 = vld [vmem:[%s726] sm:$0xf]
        %v2310 = vld [vmem:[%s726 + $0x4] sm:$0xf]
        %v2311 = vld [vmem:[%s726 + $0x8] sm:$0xf]
        %v2312 = vld [vmem:[%s726 + $0xc] sm:$0xf]
        %v2313 = vld [vmem:[%s729] sm:$0x1]
        %v2315 = vperm.slane %v2313, 0
        %v2321 = vunpack.c.l.b16 %v2309
        %v2322 = vunpack.c.l.b16 %v2310
        %v2323 = vunpack.c.l.b16 %v2311
        %v2324 = vunpack.c.l.b16 %v2312
        %v2325 = vpack.c.b16 %v2322, %v2321
        %v2326 = vpack.c.b16 %v2324, %v2323
        %v2330 = vsel %vm766, %v2308, 0
        %2332 = vmatpush.bf16.msra.mxu0 0
        %2333 = vmatpush.bf16.msra.mxu0 0
        %2334 = vmatpush.bf16.msra.mxu0 0
        %2335 = vmatpush.bf16.msra.mxu0 0
        %2336 = vmatpush.bf16.msra.mxu0 0
        %2337 = vmatpush.bf16.msra.mxu0 0
        %2338 = vmatpush.bf16.msra.mxu0 %v2326
        %2339 = vmatpush.bf16.msra.mxu0 %v2325
        %2340 = vmatmul.bf16.gmra.mxu0 %v2330
        %v2341 = vpop.f32.mrf.mxu0
        %v2342 = vadd.f32 %v2315, %v2341
        %v2343 = vpop.f32.mrf.mxu0
        %v2344 = vadd.f32 %v2315, %v2343
        %2345 = vdwg.mxu0
        %v2346 = vmul.f32 %v2342, 1.702
        %v2347 = vmul.f32 %v2344, 1.702
        %v2348 = vxor.u32 %v2346, 2147483648
        %v2349 = vxor.u32 %v2347, 2147483648
        %v2350 = vmul.f32 %v2348, 1.442695
        %v2351 = vpow.pop %v2350
        %v2352 = vmul.f32 %v2349, 1.442695
        %v2353 = vpow.pop %v2352
        %v2354 = vadd.f32 %v2351, 1.0
        %v2355 = vadd.f32 %v2353, 1.0
        %v2356 = vrcp.pop %v2354
        %v2357 = vmul.f32 %v2354, %v2356
        %v2358 = vsub.f32 1.0, %v2357
        %v2359 = vmul.f32 %v2356, %v2358
        %v2360 = vadd.f32 %v2356, %v2359
        %vm2361 = vweird.f32 %v2354
        %vm2362 = vweird.f32 %v2356
        %vm2363 = vmor %vm2361, %vm2362
        %v2364 = vsel %vm2363, %v2356, %v2360
        %v2365 = vand.u32 2147483647, %v2354
        %vm2366 = vcmp.eq.f32.partialorder %v2365, 8.507059e+37
        %v2367 = vand.u32 %v2354, 2147483648
        %v2368 = vor.u32 1.1754944e-38, %v2367
        %v2369 = vsel %vm2366, %v2368, %v2364
        %v2370 = vmul.f32 1.0, %v2369
        %v2371 = vrcp.pop %v2355
        %v2372 = vmul.f32 %v2355, %v2371
        %v2373 = vsub.f32 1.0, %v2372
        %v2374 = vmul.f32 %v2371, %v2373
        %v2375 = vadd.f32 %v2371, %v2374
        %vm2376 = vweird.f32 %v2355
        %vm2377 = vweird.f32 %v2371
        %vm2378 = vmor %vm2376, %vm2377
        %v2379 = vsel %vm2378, %v2371, %v2375
        %v2380 = vand.u32 2147483647, %v2355
        %vm2381 = vcmp.eq.f32.partialorder %v2380, 8.507059e+37
        %v2382 = vand.u32 %v2355, 2147483648
        %v2383 = vor.u32 1.1754944e-38, %v2382
        %v2384 = vsel %vm2381, %v2383, %v2379
        %v2385 = vmul.f32 1.0, %v2384
        %v2386 = vmul.f32 %v2342, %v2370
        %v2387 = vmul.f32 %v2344, %v2385
        %v2388 = vpack.c.bf16 %v2387, %v2386
        %v2389 = vld [vmem:[%s734] sm:$0xf]
        %v2390 = vld [vmem:[%s734 + $0x4] sm:$0xf]
        %v2391 = vld [vmem:[%s734 + $0x8] sm:$0xf]
        %v2392 = vld [vmem:[%s734 + $0xc] sm:$0xf]
        %v2393 = vld [vmem:[%s734 + $0x10] sm:$0xf]
        %v2394 = vld [vmem:[%s734 + $0x14] sm:$0xf]
        %v2395 = vld [vmem:[%s734 + $0x18] sm:$0xf]
        %v2396 = vld [vmem:[%s734 + $0x1c] sm:$0xf]
        %v2397 = vld [vmem:[%s734 + $0x20] sm:$0xf]
        %v2398 = vld [vmem:[%s734 + $0x24] sm:$0xf]
        %v2399 = vld [vmem:[%s734 + $0x28] sm:$0xf]
        %v2400 = vld [vmem:[%s734 + $0x2c] sm:$0xf]
        %v2401 = vld [vmem:[%s734 + $0x30] sm:$0xf]
        %v2402 = vld [vmem:[%s734 + $0x34] sm:$0xf]
        %v2403 = vld [vmem:[%s734 + $0x38] sm:$0xf]
        %v2404 = vld [vmem:[%s734 + $0x3c] sm:$0xf]
        %v2405 = vld [vmem:[%s737] sm:$0x1]
        %v2407 = vperm.slane %v2405, 0
        %v2425 = vunpack.c.l.b16 %v2389
        %v2426 = vunpack.c.l.b16 %v2390
        %v2427 = vunpack.c.l.b16 %v2391
        %v2428 = vunpack.c.l.b16 %v2392
        %v2429 = vunpack.c.l.b16 %v2393
        %v2430 = vunpack.c.l.b16 %v2394
        %v2431 = vunpack.c.l.b16 %v2395
        %v2432 = vunpack.c.l.b16 %v2396
        %v2433 = vunpack.c.l.b16 %v2397
        %v2434 = vunpack.c.l.b16 %v2398
        %v2435 = vunpack.c.l.b16 %v2399
        %v2436 = vunpack.c.l.b16 %v2400
        %v2437 = vunpack.c.l.b16 %v2401
        %v2438 = vunpack.c.l.b16 %v2402
        %v2439 = vunpack.c.l.b16 %v2403
        %v2440 = vunpack.c.l.b16 %v2404
        %v2441 = vpack.c.b16 %v2426, %v2425
        %v2442 = vpack.c.b16 %v2428, %v2427
        %v2443 = vpack.c.b16 %v2430, %v2429
        %v2444 = vpack.c.b16 %v2432, %v2431
        %v2445 = vpack.c.b16 %v2434, %v2433
        %v2446 = vpack.c.b16 %v2436, %v2435
        %v2447 = vpack.c.b16 %v2438, %v2437
        %v2448 = vpack.c.b16 %v2440, %v2439
        %2457 = vmatpush.bf16.msra.mxu0 %v2448
        %2458 = vmatpush.bf16.msra.mxu0 %v2447
        %2459 = vmatpush.bf16.msra.mxu0 %v2446
        %2460 = vmatpush.bf16.msra.mxu0 %v2445
        %2461 = vmatpush.bf16.msra.mxu0 %v2444
        %2462 = vmatpush.bf16.msra.mxu0 %v2443
        %2463 = vmatpush.bf16.msra.mxu0 %v2442
        %2464 = vmatpush.bf16.msra.mxu0 %v2441
        %2465 = vmatmul.bf16.gmra.mxu0 %v2388
        %v2466 = vpop.f32.mrf.mxu0
        %v2467 = vadd.f32 %v2407, %v2466
        %v2468 = vpop.f32.mrf.mxu0
        %v2469 = vadd.f32 %v2407, %v2468
        %2470 = vdwg.mxu0
        %v2471 = vadd.f32 %v2250, %v2467
        %v2472 = vadd.f32 %v2251, %v2469
        %2473 = vst.msk [vmem:[#allocation2] sm:$0xff] %vm766, %v2471
        %2474 = vst.msk [vmem:[#allocation2 + $0x8] sm:$0xff] %vm766, %v2472
        %p2475 = scmp.eq.s32.totalorder %s35, 1
        // Predicated region
        $region89: #{tpu_custom_call.1} parent=83 // pred_check
          %p2476 = pneg %p2475
        $region90: #{tpu_custom_call.1} parent=83 // pred_check_branch
          %2478 = sbr.rel (%p2476) target = $region92
        $region91: #{tpu_custom_call.1} parent=83 // pred_region
          %v2479 = vld [vmem:[%s14] sm:$0x1]
          %v2480 = vld [vmem:[%s15] sm:$0x1]
          %v2481 = vsel %vm766, %v2471, 0.0
          %2482 = vadd.xlane.f32.xlu0 %v2481
          %v2483 = vpop.xlane.xlu0 %2482
          %v2484 = vsel %vm766, %v2472, 0.0
          %2485 = vadd.xlane.f32.xlu0 %v2484
          %v2486 = vpop.xlane.xlu0 %2485
          %v2487 = vmul.f32 %v2483, %v779
          %v2488 = vmul.f32 %v2486, %v779
          %v2489 = vsub.f32 %v2471, %v2487
          %v2490 = vsub.f32 %v2472, %v2488
          %v2491 = vmul.f32 %v2489, %v2489
          %v2492 = vmul.f32 %v2490, %v2490
          %v2493 = vsel %vm766, %v2491, 0.0
          %2494 = vadd.xlane.f32.xlu0 %v2493
          %v2495 = vpop.xlane.xlu0 %2494
          %v2496 = vsel %vm766, %v2492, 0.0
          %2497 = vadd.xlane.f32.xlu0 %v2496
          %v2498 = vpop.xlane.xlu0 %2497
          %v2499 = vmul.f32 %v2495, %v779
          %v2500 = vmul.f32 %v2498, %v779
          %v2501 = vadd.f32 %v2499, 1e-05
          %v2502 = vadd.f32 %v2500, 1e-05
          %v2503 = vrsqrt.pop %v2501
          %v2504 = vmul.f32 %v2503, %v2501
          %v2505 = vmul.f32 %v2504, %v2503
          %v2506 = vmul.f32 0.5, %v2505
          %v2507 = vsub.f32 1.5, %v2506
          %v2508 = vmul.f32 %v2503, %v2507
          %vm2509 = vweird.f32 %v2501
          %vm2510 = vweird.f32 %v2503
          %vm2511 = vmor %vm2509, %vm2510
          %v2512 = vsel %vm2511, %v2503, %v2508
          %v2513 = vrsqrt.pop %v2502
          %v2514 = vmul.f32 %v2513, %v2502
          %v2515 = vmul.f32 %v2514, %v2513
          %v2516 = vmul.f32 0.5, %v2515
          %v2517 = vsub.f32 1.5, %v2516
          %v2518 = vmul.f32 %v2513, %v2517
          %vm2519 = vweird.f32 %v2502
          %vm2520 = vweird.f32 %v2513
          %vm2521 = vmor %vm2519, %vm2520
          %v2522 = vsel %vm2521, %v2513, %v2518
          %v2523 = vmul.f32 %v2489, %v2512
          %v2524 = vmul.f32 %v2490, %v2522
          %v2526 = vperm.slane %v2479, 0
          %v2528 = vmul.f32 %v2523, %v2526
          %v2529 = vmul.f32 %v2524, %v2526
          %v2531 = vperm.slane %v2480, 0
          %v2533 = vadd.f32 %v2528, %v2531
          %v2534 = vadd.f32 %v2529, %v2531
          %2535 = vst.msk [vmem:[%s685] sm:$0xff] %vm766, %v2533
          %2536 = vst.msk [vmem:[%s685 + $0x8] sm:$0xff] %vm766, %v2534
        $region92: #{tpu_custom_call.1} parent=83 // pred_fallthru
          _
        %s2537 = sand.u32 %s456, 1
        %s2538 = scalar_lea.sflag [#allocation4], %s2537
        %s2539 = sand.u32 %s456, 1
        %s2540 = smul.addr %s2539, 16
        %s2541 = scalar_lea.vmem [#allocation3], %s2540
        // Predicated region
        $region93: #{tpu_custom_call.1} parent=83 // pred_check
          %p2542 = pneg %p466
        $region94: #{tpu_custom_call.1} parent=83 // pred_check_branch
          %2544 = sbr.rel (%p2542) target = $region96
        $region95: #{tpu_custom_call.1} parent=83 // pred_region
          %2546 = vsyncadd %s2538, 0
          %s2547 = smul.addr %s34, 2
          %s2548 = smul.addr %s2547, 8
          %s2549 = scalar_lea.hbm %s16, %s2548
          %s2550 = sshll.u32 %s2541, 4
          %s2551 = int_to_ptr.vmem [resolvable:$true] %s2550
          %s2552 = sshll.u32 %s2549, 4
          %s2553 = int_to_ptr.hbm [resolvable:$true] %s2552
          %2558 = dma.vmem_to_hbm [thread:$0]  %s2551, 256, %s2553, %s2538, 128, 128, 8
        $region96: #{tpu_custom_call.1} parent=83 // pred_fallthru
          _
      $region84: #{tpu_custom_call.1} parent=5 // pred_fallthru
        _
      %p2559 = scmp.le.s32.totalorder 2, %s25
      // Predicated region
      $region97: #{tpu_custom_call.1} parent=5 // pred_check
        %p2560 = pneg %p2559
      $region98: #{tpu_custom_call.1} parent=5 // pred_check_branch
        %2562 = sbr.rel (%p2560) target = $region100
      $region99: #{tpu_custom_call.1} parent=5 // pred_region
        %s2563 = ssub.s32 %s25, 2
        // Predicated region
        $region101: #{tpu_custom_call.1} parent=99 // pred_check
          %p2564 = pneg %p472
        $region102: #{tpu_custom_call.1} parent=99 // pred_check_branch
          %2566 = sbr.rel (%p2564) target = $region104
        $region103: #{tpu_custom_call.1} parent=99 // pred_region
          %s2567 = sand.u32 %s457, 1
          %s2568 = scalar_lea.sflag [#allocation4], %s2567
          %s2569 = sand.u32 %s457, 1
          %s2570 = smul.addr %s2569, 16
          %s2571 = scalar_lea.vmem [#allocation3], %s2570
          %2573 = dma.done %s2568, 256
        $region104: #{tpu_custom_call.1} parent=99 // pred_fallthru
          _
      $region100: #{tpu_custom_call.1} parent=5 // pred_fallthru
        _
    $region6: #{tpu_custom_call.1} parent=1 // loop_footer
      %s29 = sadd.s32 1, %s25
    $region7: #{tpu_custom_call.1} parent=1 // loop_footer_branch
      %24 = sbr.rel target = $region3
    $region8: #{tpu_custom_call.1} parent=1 // loop_exit
      _
    %2574 = vsyncpa [#allocation4], 1
    %s2575 = scalar_lea.sflag [#allocation4], 1
    %2576 = vsyncpa %s2575, 1

</llo_original>
